<compile_context>
chip_gen: v7x
topology: tpu7x:2x2x1
jax: 0.10.0
libtpu: 0.0.40
codegen_flags: <defaults>
</compile_context>

<pallas_src>
import functools

import jax
import jax.numpy as jnp
from jax import lax
from jax.experimental import pallas as pl
from jax.experimental.pallas import tpu as pltpu


def _round_up(n, m):
    return ((n + m - 1) // m) * m


def _largest_divisor_leq(n, cap):
    for c in range(min(n, cap), 0, -1):
        if n % c == 0:
            return c
    return 1


def tra_lstm_kernel(x_ref, wih0_ref, b0_ref, whh0_ref, wih1_ref, whh1_ref,
                    b1_ref, wpred_ref, bpred_ref, pred_ref,
                    xp_ref, h1_ref, c1_ref, h2_ref, c2_ref, *, bt, h, tc):
    """One (batch-tile, time-chunk) grid step of the 2-layer LSTM + predictor.

    Shapes (weights bf16, biases/state f32):
      x_ref    : (Tc, BT, D)   time-major input chunk
      wih0_ref : (D, 4H)       layer-0 input weights
      b0_ref   : (1, 4H)       layer-0 combined bias (b_ih + b_hh)
      whh0_ref : (H, 4H)       layer-0 hidden weights
      wih1_ref : (H, 4H)       layer-1 input weights
      whh1_ref : (H, 4H)       layer-1 hidden weights
      b1_ref   : (1, 4H)       layer-1 combined bias
      wpred_ref: (H, SP)       predictor weight (lane-padded)
      bpred_ref: (1, SP)       predictor bias
      pred_ref : (BT, SP)      output (lane-padded, written on last time chunk)
      xp_ref   : (Tc*BT, 4H)   scratch for the chunk's x-projection
      h1/c1/h2/c2_ref : (BT,H) LSTM state carried across time chunks
    """
    t_idx = pl.program_id(1)
    g4 = 4 * h
    d = x_ref.shape[-1]

    @pl.when(t_idx == 0)
    def _init():
        z = jnp.zeros((bt, h), jnp.float32)
        h1_ref[...] = z
        c1_ref[...] = z
        h2_ref[...] = z
        c2_ref[...] = z

    # Layer-0 input projection for the whole chunk in one MXU matmul (bias
    # folded in); bf16 operands, f32 accumulation.  Off the per-step path.
    x_chunk = x_ref[...].reshape(tc * bt, d).astype(jnp.bfloat16)
    xp_ref[...] = (jnp.dot(x_chunk, wih0_ref[...],
                           preferred_element_type=jnp.float32) + b0_ref[...])

    whh0 = whh0_ref[...]
    wih1 = wih1_ref[...]
    whh1 = whh1_ref[...]
    b1 = jnp.broadcast_to(b1_ref[...], (bt, g4))  # hoisted, not per step

    # PyTorch LSTM gate order [i | f | g | o], each h lanes wide.  With the
    # default H=32 all four gates fit in one 128-lane block: apply one sigmoid
    # + one tanh over the packed vreg and select by lane index.
    lane = lax.broadcasted_iota(jnp.int32, (bt, g4), 1)
    is_g = (lane >= 2 * h) & (lane < 3 * h)

    def act_split(gates):
        a = jnp.where(is_g, jnp.tanh(gates), jax.nn.sigmoid(gates))
        return (a[:, 0:h], a[:, h:2 * h], a[:, 2 * h:3 * h], a[:, 3 * h:4 * h])

    def step(k, carry):
        h1, c1, h2, c2 = carry
        # Layer-1 recurrent dot first: depends only on the previous step's h2,
        # so it overlaps with layer 0 (shorter serial critical path than the
        # fused [h1,h2] dot, and no per-step lane concat).
        g1 = jnp.dot(h2.astype(jnp.bfloat16), whh1,
                     preferred_element_type=jnp.float32) + b1
        row = pl.multiple_of(k * bt, bt)
        g0 = xp_ref[pl.ds(row, bt), :] + jnp.dot(
            h1.astype(jnp.bfloat16), whh0, preferred_element_type=jnp.float32)
        i0, f0, gg0, o0 = act_split(g0)
        c1 = f0 * c1 + i0 * gg0
        h1 = o0 * jnp.tanh(c1)
        g1 = g1 + jnp.dot(h1.astype(jnp.bfloat16), wih1,
                          preferred_element_type=jnp.float32)
        i1, f1, gg1, o1 = act_split(g1)
        c2 = f1 * c2 + i1 * gg1
        h2 = o1 * jnp.tanh(c2)
        return (h1, c1, h2, c2)

    carry0 = (h1_ref[...], c1_ref[...], h2_ref[...], c2_ref[...])
    h1, c1, h2, c2 = lax.fori_loop(0, tc, step, carry0, unroll=min(tc, 8))
    h1_ref[...] = h1
    c1_ref[...] = c1
    h2_ref[...] = h2
    c2_ref[...] = c2

    # Final predictor on the last time chunk: lane-padded (BT, SP) slab ->
    # unmasked stores; sliced to (B, S) on the host.
    @pl.when(t_idx == pl.num_programs(1) - 1)
    def _final():
        pred_ref[...] = (jnp.dot(h2.astype(jnp.bfloat16), wpred_ref[...],
                                 preferred_element_type=jnp.float32)
                         + bpred_ref[...])


def init_params(key, input_dim, hidden_dim, num_states=1):
    """Deterministic init mimicking PyTorch default uniform(-1/sqrt(H), 1/sqrt(H)).

    Stored compact (pre-transposed, unpadded, f32); the wrapper builds bf16 /
    lane-padded kernel operands.
    """
    H, D, S = hidden_dim, input_dim, num_states
    ks = jax.random.split(key, 10)
    bnd = 1.0 / (H ** 0.5)

    def u(k, shape):
        return jax.random.uniform(k, shape, jnp.float32, -bnd, bnd)

    return dict(
        wih0=u(ks[0], (D, 4 * H)),
        whh0=u(ks[1], (H, 4 * H)),
        b0=(u(ks[2], (1, 4 * H)) + u(ks[3], (1, 4 * H))),
        wih1=u(ks[4], (H, 4 * H)),
        whh1=u(ks[5], (H, 4 * H)),
        b1=(u(ks[6], (1, 4 * H)) + u(ks[7], (1, 4 * H))),
        wpred=u(ks[8], (H, S)),
        bpred=u(ks[9], (1, S)),
    )


def _prepare_kernel_params(p, S, SP):
    """bf16 weights for the MXU, f32 biases; predictor lane-padded to SP."""
    bf16 = lambda w: w.astype(jnp.bfloat16)
    wih0 = bf16(p["wih0"])
    whh0 = bf16(p["whh0"])
    wih1 = bf16(p["wih1"])
    whh1 = bf16(p["whh1"])
    wpred = bf16(jnp.pad(p["wpred"], ((0, 0), (0, SP - S))))
    bpred = jnp.pad(p["bpred"], ((0, 0), (0, SP - S)))
    return wih0, p["b0"], whh0, wih1, whh1, p["b1"], wpred, bpred


def tra_forward(x, params, *, max_batch_tile=128, max_time_chunk=32):
    """x: (B, T, input_dim) float32.  Returns (final_pred, dict) like tra.forward."""
    B, T, D = x.shape
    H = params["whh0"].shape[0]
    S = params["wpred"].shape[1]
    SP = _round_up(S, 128)                   # lane-pad predictor output

    b8 = _round_up(B, 8)
    BT = b8 if b8 <= max_batch_tile else _round_up(max_batch_tile, 8)
    Bp = _round_up(B, BT)
    NB = Bp // BT
    TC = _largest_divisor_leq(T, max_time_chunk)
    NT = T // TC

    wih0, b0, whh0, wih1, whh1, b1, wpred, bpred = _prepare_kernel_params(
        params, S, SP)

    # time-major, batch padded to Bp (one-time host pass over x).
    x_tm = jnp.transpose(x.astype(jnp.float32), (1, 0, 2))     # (T, B, D)
    x_tm = jnp.pad(x_tm, ((0, 0), (0, Bp - B), (0, 0)))         # (T, Bp, D)

    kernel = functools.partial(tra_lstm_kernel, bt=BT, h=H, tc=TC)
    vmem = pl.BlockSpec(memory_space=pltpu.MemorySpace.VMEM)

    # Advisory cost estimate.
    flops = 2 * T * Bp * 4 * H * (D + 3 * H) + 2 * Bp * H * SP
    transc = T * Bp * (2 * (2 * 4 * H) + 2 * H)
    bytes_acc = (T * Bp * D * 4
                 + ((D + 3 * H) * 4 * H + H * SP) * 2
                 + (2 * 4 * H + SP) * 4
                 + Bp * SP * 4)

    # Scoped-VMEM budget sized to the actual buffers (double-buffered blocks).
    bytes_x_blk = TC * BT * D * 4
    bytes_out_blk = BT * SP * 4
    bytes_weights = ((D + 3 * H) * 4 * H + H * SP) * 2 + (2 * 4 * H + SP) * 4
    bytes_scratch = TC * BT * 4 * H * 4 + 4 * BT * H * 4
    needed = 2 * bytes_x_blk + 2 * bytes_out_blk + 2 * bytes_weights + bytes_scratch
    vmem_limit = int(min(64 << 20, max(2 * needed + (2 << 20), 32 << 20)))

    preds_padded = pl.pallas_call(
        kernel,
        out_shape=jax.ShapeDtypeStruct((Bp, SP), jnp.float32),
        grid_spec=pltpu.PrefetchScalarGridSpec(
            num_scalar_prefetch=0,
            grid=(NB, NT),
            in_specs=[pl.BlockSpec((TC, BT, D), lambda b, t: (t, b, 0))]
                     + [vmem] * 8,
            out_specs=pl.BlockSpec((BT, SP), lambda b, t: (b, 0)),
            scratch_shapes=[
                pltpu.VMEM((TC * BT, 4 * H), jnp.float32),   # x-projection
                pltpu.VMEM((BT, H), jnp.float32),            # h1
                pltpu.VMEM((BT, H), jnp.float32),            # c1
                pltpu.VMEM((BT, H), jnp.float32),            # h2
                pltpu.VMEM((BT, H), jnp.float32),            # c2
            ]),
        compiler_params=pltpu.CompilerParams(
            dimension_semantics=("parallel", "arbitrary"),
            vmem_limit_bytes=vmem_limit),
        cost_estimate=pl.CostEstimate(flops=int(flops),
                                      transcendentals=int(transc),
                                      bytes_accessed=int(bytes_acc)),
    )(x_tm, wih0, b0, whh0, wih1, whh1, b1, wpred, bpred)

    preds = preds_padded[:B, :S]
    final_pred = preds                                  # num_states == 1 path
    loss_opt_transport = jnp.zeros((1,), jnp.float32)   # torch.Tensor([0])
    return final_pred, {"loss_opt_transport": loss_opt_transport,
                        "hidden": preds, "preds": preds}


def _reference_forward(x, params):
    """Pure-JAX f32 reference of the same forward for a sanity check."""
    B, T, D = x.shape
    H = params["whh0"].shape[0]

    def cell(x_t, h, c, wih, whh, b):
        g = x_t @ wih + h @ whh + b
        i, f, gg, o = (jax.nn.sigmoid(g[:, :H]), jax.nn.sigmoid(g[:, H:2 * H]),
                       jnp.tanh(g[:, 2 * H:3 * H]), jax.nn.sigmoid(g[:, 3 * H:]))
        c = f * c + i * gg
        return o * jnp.tanh(c), c

    h1 = c1 = h2 = c2 = jnp.zeros((B, H), jnp.float32)
    for t in range(T):
        h1, c1 = cell(x[:, t, :], h1, c1, params["wih0"], params["whh0"], params["b0"])
        h2, c2 = cell(h1, h2, c2, params["wih1"], params["whh1"], params["b1"])
    return h2 @ params["wpred"] + params["bpred"]


if __name__ == "__main__":
    key = jax.random.PRNGKey(0)
    k_x, k_p = jax.random.split(key)

    B, T, INPUT_DIM, HIDDEN_DIM, NUM_STATES = 4, 8, 16, 32, 1
    x = jax.random.normal(k_x, (B, T, INPUT_DIM), jnp.float32)
    params = init_params(k_p, INPUT_DIM, HIDDEN_DIM, NUM_STATES)

    final_pred, aux = tra_forward(x, params)
    jax.block_until_ready(final_pred)
    jax.block_until_ready(aux["loss_opt_transport"])

    ref = _reference_forward(x, params)
    assert final_pred.shape == (B, NUM_STATES)
    # bf16 MXU operands (f32 state/accumulation) -> loosened tolerance vs f32 ref.
    assert jnp.allclose(final_pred, ref, atol=5e-2, rtol=5e-2), (
        "mismatch vs reference, max abs err "
        f"{jnp.max(jnp.abs(final_pred - ref))}")
    assert jnp.allclose(aux["preds"], final_pred)
    assert aux["loss_opt_transport"].shape == (1,)

    print("KERNEL_OK")
</pallas_src>

<mosaic_0001>
module attributes {stable_mosaic.version = 11 : i64} {
  func.func @tra_lstm_kernel(%arg0: i32, %arg1: i32, %arg2: memref<8x8x16xf32, #tpu.memory_space<vmem>>, %arg3: memref<16x128xbf16, #tpu.memory_space<vmem>>, %arg4: memref<1x128xf32, #tpu.memory_space<vmem>>, %arg5: memref<32x128xbf16, #tpu.memory_space<vmem>>, %arg6: memref<32x128xbf16, #tpu.memory_space<vmem>>, %arg7: memref<32x128xbf16, #tpu.memory_space<vmem>>, %arg8: memref<1x128xf32, #tpu.memory_space<vmem>>, %arg9: memref<32x128xbf16, #tpu.memory_space<vmem>>, %arg10: memref<1x128xf32, #tpu.memory_space<vmem>>, %arg11: memref<8x128xf32, #tpu.memory_space<vmem>>, %arg12: memref<64x128xf32, #tpu.memory_space<vmem>>, %arg13: memref<8x32xf32, #tpu.memory_space<vmem>>, %arg14: memref<8x32xf32, #tpu.memory_space<vmem>>, %arg15: memref<8x32xf32, #tpu.memory_space<vmem>>, %arg16: memref<8x32xf32, #tpu.memory_space<vmem>>) attributes {dimension_semantics = [#tpu.dimension_semantics<parallel>, #tpu.dimension_semantics<arbitrary>], iteration_bounds = array<i64: 1, 1>, scalar_prefetch = 0 : i64, scratch_operands = 5 : i64, tpu.core_type = #tpu.core_type<tc>, window_params = [{transform_indices = @transform_0, window_bounds = array<i64: 8, 8, 16>}, {pipeline_mode = #tpu.pipeline_mode<synchronous>, transform_indices = @transform_1, window_bounds = array<i64: 16, 128>}, {pipeline_mode = #tpu.pipeline_mode<synchronous>, transform_indices = @transform_2, window_bounds = array<i64: 1, 128>}, {pipeline_mode = #tpu.pipeline_mode<synchronous>, transform_indices = @transform_3, window_bounds = array<i64: 32, 128>}, {pipeline_mode = #tpu.pipeline_mode<synchronous>, transform_indices = @transform_4, window_bounds = array<i64: 32, 128>}, {pipeline_mode = #tpu.pipeline_mode<synchronous>, transform_indices = @transform_5, window_bounds = array<i64: 32, 128>}, {pipeline_mode = #tpu.pipeline_mode<synchronous>, transform_indices = @transform_6, window_bounds = array<i64: 1, 128>}, {pipeline_mode = #tpu.pipeline_mode<synchronous>, transform_indices = @transform_7, window_bounds = array<i64: 32, 128>}, {pipeline_mode = #tpu.pipeline_mode<synchronous>, transform_indices = @transform_8, window_bounds = array<i64: 1, 128>}, {transform_indices = @transform_9, window_bounds = array<i64: 8, 128>}]} {
    %c0_i32 = arith.constant 0 : i32
    %0 = arith.cmpi eq, %arg1, %c0_i32 : i32
    %1 = arith.extui %0 : i1 to i32
    %c0_i32_0 = arith.constant 0 : i32
    %2 = arith.cmpi ne, %1, %c0_i32_0 : i32
    scf.if %2 {
      %cst_92 = arith.constant 0.000000e+00 : f32
      %395 = vector.broadcast %cst_92 : f32 to vector<8x32xf32>
      %c0_93 = arith.constant 0 : index
      %c0_94 = arith.constant 0 : index
      %396 = vector.load %arg13[%c0_93, %c0_94] : memref<8x32xf32, #tpu.memory_space<vmem>>, vector<8x32xf32>
      tpu.vector_store %arg13[%c0_93, %c0_94], %395 {strides = array<i32>} : memref<8x32xf32, #tpu.memory_space<vmem>>, vector<8x32xf32>,
      %c0_95 = arith.constant 0 : index
      %c0_96 = arith.constant 0 : index
      %397 = vector.load %arg14[%c0_95, %c0_96] : memref<8x32xf32, #tpu.memory_space<vmem>>, vector<8x32xf32>
      tpu.vector_store %arg14[%c0_95, %c0_96], %395 {strides = array<i32>} : memref<8x32xf32, #tpu.memory_space<vmem>>, vector<8x32xf32>,
      %c0_97 = arith.constant 0 : index
      %c0_98 = arith.constant 0 : index
      %398 = vector.load %arg15[%c0_97, %c0_98] : memref<8x32xf32, #tpu.memory_space<vmem>>, vector<8x32xf32>
      tpu.vector_store %arg15[%c0_97, %c0_98], %395 {strides = array<i32>} : memref<8x32xf32, #tpu.memory_space<vmem>>, vector<8x32xf32>,
      %c0_99 = arith.constant 0 : index
      %c0_100 = arith.constant 0 : index
      %399 = vector.load %arg16[%c0_99, %c0_100] : memref<8x32xf32, #tpu.memory_space<vmem>>, vector<8x32xf32>
      tpu.vector_store %arg16[%c0_99, %c0_100], %395 {strides = array<i32>} : memref<8x32xf32, #tpu.memory_space<vmem>>, vector<8x32xf32>,
    } else {
    }
    %c0 = arith.constant 0 : index
    %c0_1 = arith.constant 0 : index
    %c0_2 = arith.constant 0 : index
    %3 = vector.load %arg2[%c0, %c0_1, %c0_2] : memref<8x8x16xf32, #tpu.memory_space<vmem>>, vector<8x8x16xf32>
    %4 = vector.shape_cast %3 : vector<8x8x16xf32> to vector<64x16xf32>
    %5 = arith.truncf %4 : vector<64x16xf32> to vector<64x16xbf16>
    %c0_3 = arith.constant 0 : index
    %c0_4 = arith.constant 0 : index
    %6 = vector.load %arg3[%c0_3, %c0_4] : memref<16x128xbf16, #tpu.memory_space<vmem>>, vector<16x128xbf16>
    %cst = arith.constant dense<0.000000e+00> : vector<64x128xf32>
    %7 = tpu.matmul %5, %6, %cst {dimension_numbers = #tpu.dot_dimension_numbers<[1], [0], [0], [1], [0, 0, 1, 1], [], []>} : vector<64x16xbf16>, vector<16x128xbf16>, vector<64x128xf32> -> vector<64x128xf32>
    %c0_5 = arith.constant 0 : index
    %c0_6 = arith.constant 0 : index
    %8 = vector.load %arg4[%c0_5, %c0_6] : memref<1x128xf32, #tpu.memory_space<vmem>>, vector<1x128xf32>
    %9 = vector.broadcast %8 : vector<1x128xf32> to vector<64x128xf32>
    %10 = arith.addf %7, %9 : vector<64x128xf32>
    %c0_7 = arith.constant 0 : index
    %c0_8 = arith.constant 0 : index
    %11 = vector.load %arg12[%c0_7, %c0_8] : memref<64x128xf32, #tpu.memory_space<vmem>>, vector<64x128xf32>
    tpu.vector_store %arg12[%c0_7, %c0_8], %10 {strides = array<i32>} : memref<64x128xf32, #tpu.memory_space<vmem>>, vector<64x128xf32>,
    %c0_9 = arith.constant 0 : index
    %c0_10 = arith.constant 0 : index
    %12 = vector.load %arg5[%c0_9, %c0_10] : memref<32x128xbf16, #tpu.memory_space<vmem>>, vector<32x128xbf16>
    %c0_11 = arith.constant 0 : index
    %c0_12 = arith.constant 0 : index
    %13 = vector.load %arg6[%c0_11, %c0_12] : memref<32x128xbf16, #tpu.memory_space<vmem>>, vector<32x128xbf16>
    %c0_13 = arith.constant 0 : index
    %c0_14 = arith.constant 0 : index
    %14 = vector.load %arg7[%c0_13, %c0_14] : memref<32x128xbf16, #tpu.memory_space<vmem>>, vector<32x128xbf16>
    %c0_15 = arith.constant 0 : index
    %c0_16 = arith.constant 0 : index
    %15 = vector.load %arg8[%c0_15, %c0_16] : memref<1x128xf32, #tpu.memory_space<vmem>>, vector<1x128xf32>
    %16 = vector.shape_cast %15 : vector<1x128xf32> to vector<1x128xf32>
    %17 = vector.broadcast %16 : vector<1x128xf32> to vector<8x128xf32>
    %18 = tpu.iota {dimensions = array<i32: 1>} : vector<8x128xi32>
    %c64_i32 = arith.constant 64 : i32
    %19 = vector.broadcast %c64_i32 : i32 to vector<8x128xi32>
    %20 = arith.cmpi sge, %18, %19 : vector<8x128xi32>
    %c96_i32 = arith.constant 96 : i32
    %21 = vector.broadcast %c96_i32 : i32 to vector<8x128xi32>
    %22 = arith.cmpi slt, %18, %21 : vector<8x128xi32>
    %23 = arith.andi %20, %22 : vector<8x128xi1>
    %c0_17 = arith.constant 0 : index
    %c0_18 = arith.constant 0 : index
    %24 = vector.load %arg13[%c0_17, %c0_18] : memref<8x32xf32, #tpu.memory_space<vmem>>, vector<8x32xf32>
    %c0_19 = arith.constant 0 : index
    %c0_20 = arith.constant 0 : index
    %25 = vector.load %arg14[%c0_19, %c0_20] : memref<8x32xf32, #tpu.memory_space<vmem>>, vector<8x32xf32>
    %c0_21 = arith.constant 0 : index
    %c0_22 = arith.constant 0 : index
    %26 = vector.load %arg15[%c0_21, %c0_22] : memref<8x32xf32, #tpu.memory_space<vmem>>, vector<8x32xf32>
    %c0_23 = arith.constant 0 : index
    %c0_24 = arith.constant 0 : index
    %27 = vector.load %arg16[%c0_23, %c0_24] : memref<8x32xf32, #tpu.memory_space<vmem>>, vector<8x32xf32>
    %c0_i32_25 = arith.constant 0 : i32
    %28 = arith.truncf %26 : vector<8x32xf32> to vector<8x32xbf16>
    %cst_26 = arith.constant dense<0.000000e+00> : vector<8x128xf32>
    %29 = tpu.matmul %28, %14, %cst_26 {dimension_numbers = #tpu.dot_dimension_numbers<[1], [0], [0], [1], [0, 0, 1, 1], [], []>} : vector<8x32xbf16>, vector<32x128xbf16>, vector<8x128xf32> -> vector<8x128xf32>
    %30 = arith.addf %29, %17 : vector<8x128xf32>
    %c8_i32 = arith.constant 8 : i32
    %31 = arith.muli %c0_i32_25, %c8_i32 : i32
    %32 = tpu.assume_multiple %31, 8 : i32
    %33 = arith.index_cast %32 : i32 to index
    %c0_27 = arith.constant 0 : index
    %34 = vector.load %arg12[%33, %c0_27] : memref<64x128xf32, #tpu.memory_space<vmem>>, vector<8x128xf32>
    %35 = arith.truncf %24 : vector<8x32xf32> to vector<8x32xbf16>
    %cst_28 = arith.constant dense<0.000000e+00> : vector<8x128xf32>
    %36 = tpu.matmul %35, %12, %cst_28 {dimension_numbers = #tpu.dot_dimension_numbers<[1], [0], [0], [1], [0, 0, 1, 1], [], []>} : vector<8x32xbf16>, vector<32x128xbf16>, vector<8x128xf32> -> vector<8x128xf32>
    %37 = arith.addf %34, %36 : vector<8x128xf32>
    %38 = math.tanh %37 : vector<8x128xf32>
    %39 = arith.negf %37 : vector<8x128xf32>
    %40 = math.exp %39 : vector<8x128xf32>
    %cst_29 = arith.constant 1.000000e+00 : f32
    %41 = vector.broadcast %cst_29 : f32 to vector<8x128xf32>
    %42 = arith.addf %41, %40 : vector<8x128xf32>
    %43 = arith.divf %41, %42 : vector<8x128xf32>
    %44 = arith.select %23, %38, %43 : vector<8x128xi1>, vector<8x128xf32>
    %45 = vector.extract_strided_slice %44 {offsets = [0, 0], sizes = [8, 32], strides = [1, 1]} : vector<8x128xf32> to vector<8x32xf32>
    %46 = vector.extract_strided_slice %44 {offsets = [0, 32], sizes = [8, 32], strides = [1, 1]} : vector<8x128xf32> to vector<8x32xf32>
    %47 = vector.extract_strided_slice %44 {offsets = [0, 64], sizes = [8, 32], strides = [1, 1]} : vector<8x128xf32> to vector<8x32xf32>
    %48 = vector.extract_strided_slice %44 {offsets = [0, 96], sizes = [8, 32], strides = [1, 1]} : vector<8x128xf32> to vector<8x32xf32>
    %49 = arith.mulf %46, %25 : vector<8x32xf32>
    %50 = arith.mulf %45, %47 : vector<8x32xf32>
    %51 = arith.addf %49, %50 : vector<8x32xf32>
    %52 = math.tanh %51 : vector<8x32xf32>
    %53 = arith.mulf %48, %52 : vector<8x32xf32>
    %54 = arith.truncf %53 : vector<8x32xf32> to vector<8x32xbf16>
    %cst_30 = arith.constant dense<0.000000e+00> : vector<8x128xf32>
    %55 = tpu.matmul %54, %13, %cst_30 {dimension_numbers = #tpu.dot_dimension_numbers<[1], [0], [0], [1], [0, 0, 1, 1], [], []>} : vector<8x32xbf16>, vector<32x128xbf16>, vector<8x128xf32> -> vector<8x128xf32>
    %56 = arith.addf %30, %55 : vector<8x128xf32>
    %57 = math.tanh %56 : vector<8x128xf32>
    %58 = arith.negf %56 : vector<8x128xf32>
    %59 = math.exp %58 : vector<8x128xf32>
    %cst_31 = arith.constant 1.000000e+00 : f32
    %60 = vector.broadcast %cst_31 : f32 to vector<8x128xf32>
    %61 = arith.addf %60, %59 : vector<8x128xf32>
    %62 = arith.divf %60, %61 : vector<8x128xf32>
    %63 = arith.select %23, %57, %62 : vector<8x128xi1>, vector<8x128xf32>
    %64 = vector.extract_strided_slice %63 {offsets = [0, 0], sizes = [8, 32], strides = [1, 1]} : vector<8x128xf32> to vector<8x32xf32>
    %65 = vector.extract_strided_slice %63 {offsets = [0, 32], sizes = [8, 32], strides = [1, 1]} : vector<8x128xf32> to vector<8x32xf32>
    %66 = vector.extract_strided_slice %63 {offsets = [0, 64], sizes = [8, 32], strides = [1, 1]} : vector<8x128xf32> to vector<8x32xf32>
    %67 = vector.extract_strided_slice %63 {offsets = [0, 96], sizes = [8, 32], strides = [1, 1]} : vector<8x128xf32> to vector<8x32xf32>
    %68 = arith.mulf %65, %27 : vector<8x32xf32>
    %69 = arith.mulf %64, %66 : vector<8x32xf32>
    %70 = arith.addf %68, %69 : vector<8x32xf32>
    %71 = math.tanh %70 : vector<8x32xf32>
    %72 = arith.mulf %67, %71 : vector<8x32xf32>
    %c1_i32 = arith.constant 1 : i32
    %73 = arith.truncf %72 : vector<8x32xf32> to vector<8x32xbf16>
    %cst_32 = arith.constant dense<0.000000e+00> : vector<8x128xf32>
    %74 = tpu.matmul %73, %14, %cst_32 {dimension_numbers = #tpu.dot_dimension_numbers<[1], [0], [0], [1], [0, 0, 1, 1], [], []>} : vector<8x32xbf16>, vector<32x128xbf16>, vector<8x128xf32> -> vector<8x128xf32>
    %75 = arith.addf %74, %17 : vector<8x128xf32>
    %c8_i32_33 = arith.constant 8 : i32
    %76 = arith.muli %c1_i32, %c8_i32_33 : i32
    %77 = tpu.assume_multiple %76, 8 : i32
    %78 = arith.index_cast %77 : i32 to index
    %c0_34 = arith.constant 0 : index
    %79 = vector.load %arg12[%78, %c0_34] : memref<64x128xf32, #tpu.memory_space<vmem>>, vector<8x128xf32>
    %80 = arith.truncf %53 : vector<8x32xf32> to vector<8x32xbf16>
    %cst_35 = arith.constant dense<0.000000e+00> : vector<8x128xf32>
    %81 = tpu.matmul %80, %12, %cst_35 {dimension_numbers = #tpu.dot_dimension_numbers<[1], [0], [0], [1], [0, 0, 1, 1], [], []>} : vector<8x32xbf16>, vector<32x128xbf16>, vector<8x128xf32> -> vector<8x128xf32>
    %82 = arith.addf %79, %81 : vector<8x128xf32>
    %83 = math.tanh %82 : vector<8x128xf32>
    %84 = arith.negf %82 : vector<8x128xf32>
    %85 = math.exp %84 : vector<8x128xf32>
    %cst_36 = arith.constant 1.000000e+00 : f32
    %86 = vector.broadcast %cst_36 : f32 to vector<8x128xf32>
    %87 = arith.addf %86, %85 : vector<8x128xf32>
    %88 = arith.divf %86, %87 : vector<8x128xf32>
    %89 = arith.select %23, %83, %88 : vector<8x128xi1>, vector<8x128xf32>
    %90 = vector.extract_strided_slice %89 {offsets = [0, 0], sizes = [8, 32], strides = [1, 1]} : vector<8x128xf32> to vector<8x32xf32>
    %91 = vector.extract_strided_slice %89 {offsets = [0, 32], sizes = [8, 32], strides = [1, 1]} : vector<8x128xf32> to vector<8x32xf32>
    %92 = vector.extract_strided_slice %89 {offsets = [0, 64], sizes = [8, 32], strides = [1, 1]} : vector<8x128xf32> to vector<8x32xf32>
    %93 = vector.extract_strided_slice %89 {offsets = [0, 96], sizes = [8, 32], strides = [1, 1]} : vector<8x128xf32> to vector<8x32xf32>
    %94 = arith.mulf %91, %51 : vector<8x32xf32>
    %95 = arith.mulf %90, %92 : vector<8x32xf32>
    %96 = arith.addf %94, %95 : vector<8x32xf32>
    %97 = math.tanh %96 : vector<8x32xf32>
    %98 = arith.mulf %93, %97 : vector<8x32xf32>
    %99 = arith.truncf %98 : vector<8x32xf32> to vector<8x32xbf16>
    %cst_37 = arith.constant dense<0.000000e+00> : vector<8x128xf32>
    %100 = tpu.matmul %99, %13, %cst_37 {dimension_numbers = #tpu.dot_dimension_numbers<[1], [0], [0], [1], [0, 0, 1, 1], [], []>} : vector<8x32xbf16>, vector<32x128xbf16>, vector<8x128xf32> -> vector<8x128xf32>
    %101 = arith.addf %75, %100 : vector<8x128xf32>
    %102 = math.tanh %101 : vector<8x128xf32>
    %103 = arith.negf %101 : vector<8x128xf32>
    %104 = math.exp %103 : vector<8x128xf32>
    %cst_38 = arith.constant 1.000000e+00 : f32
    %105 = vector.broadcast %cst_38 : f32 to vector<8x128xf32>
    %106 = arith.addf %105, %104 : vector<8x128xf32>
    %107 = arith.divf %105, %106 : vector<8x128xf32>
    %108 = arith.select %23, %102, %107 : vector<8x128xi1>, vector<8x128xf32>
    %109 = vector.extract_strided_slice %108 {offsets = [0, 0], sizes = [8, 32], strides = [1, 1]} : vector<8x128xf32> to vector<8x32xf32>
    %110 = vector.extract_strided_slice %108 {offsets = [0, 32], sizes = [8, 32], strides = [1, 1]} : vector<8x128xf32> to vector<8x32xf32>
    %111 = vector.extract_strided_slice %108 {offsets = [0, 64], sizes = [8, 32], strides = [1, 1]} : vector<8x128xf32> to vector<8x32xf32>
    %112 = vector.extract_strided_slice %108 {offsets = [0, 96], sizes = [8, 32], strides = [1, 1]} : vector<8x128xf32> to vector<8x32xf32>
    %113 = arith.mulf %110, %70 : vector<8x32xf32>
    %114 = arith.mulf %109, %111 : vector<8x32xf32>
    %115 = arith.addf %113, %114 : vector<8x32xf32>
    %116 = math.tanh %115 : vector<8x32xf32>
    %117 = arith.mulf %112, %116 : vector<8x32xf32>
    %c2_i32 = arith.constant 2 : i32
    %118 = arith.truncf %117 : vector<8x32xf32> to vector<8x32xbf16>
    %cst_39 = arith.constant dense<0.000000e+00> : vector<8x128xf32>
    %119 = tpu.matmul %118, %14, %cst_39 {dimension_numbers = #tpu.dot_dimension_numbers<[1], [0], [0], [1], [0, 0, 1, 1], [], []>} : vector<8x32xbf16>, vector<32x128xbf16>, vector<8x128xf32> -> vector<8x128xf32>
    %120 = arith.addf %119, %17 : vector<8x128xf32>
    %c8_i32_40 = arith.constant 8 : i32
    %121 = arith.muli %c2_i32, %c8_i32_40 : i32
    %122 = tpu.assume_multiple %121, 8 : i32
    %123 = arith.index_cast %122 : i32 to index
    %c0_41 = arith.constant 0 : index
    %124 = vector.load %arg12[%123, %c0_41] : memref<64x128xf32, #tpu.memory_space<vmem>>, vector<8x128xf32>
    %125 = arith.truncf %98 : vector<8x32xf32> to vector<8x32xbf16>
    %cst_42 = arith.constant dense<0.000000e+00> : vector<8x128xf32>
    %126 = tpu.matmul %125, %12, %cst_42 {dimension_numbers = #tpu.dot_dimension_numbers<[1], [0], [0], [1], [0, 0, 1, 1], [], []>} : vector<8x32xbf16>, vector<32x128xbf16>, vector<8x128xf32> -> vector<8x128xf32>
    %127 = arith.addf %124, %126 : vector<8x128xf32>
    %128 = math.tanh %127 : vector<8x128xf32>
    %129 = arith.negf %127 : vector<8x128xf32>
    %130 = math.exp %129 : vector<8x128xf32>
    %cst_43 = arith.constant 1.000000e+00 : f32
    %131 = vector.broadcast %cst_43 : f32 to vector<8x128xf32>
    %132 = arith.addf %131, %130 : vector<8x128xf32>
    %133 = arith.divf %131, %132 : vector<8x128xf32>
    %134 = arith.select %23, %128, %133 : vector<8x128xi1>, vector<8x128xf32>
    %135 = vector.extract_strided_slice %134 {offsets = [0, 0], sizes = [8, 32], strides = [1, 1]} : vector<8x128xf32> to vector<8x32xf32>
    %136 = vector.extract_strided_slice %134 {offsets = [0, 32], sizes = [8, 32], strides = [1, 1]} : vector<8x128xf32> to vector<8x32xf32>
    %137 = vector.extract_strided_slice %134 {offsets = [0, 64], sizes = [8, 32], strides = [1, 1]} : vector<8x128xf32> to vector<8x32xf32>
    %138 = vector.extract_strided_slice %134 {offsets = [0, 96], sizes = [8, 32], strides = [1, 1]} : vector<8x128xf32> to vector<8x32xf32>
    %139 = arith.mulf %136, %96 : vector<8x32xf32>
    %140 = arith.mulf %135, %137 : vector<8x32xf32>
    %141 = arith.addf %139, %140 : vector<8x32xf32>
    %142 = math.tanh %141 : vector<8x32xf32>
    %143 = arith.mulf %138, %142 : vector<8x32xf32>
    %144 = arith.truncf %143 : vector<8x32xf32> to vector<8x32xbf16>
    %cst_44 = arith.constant dense<0.000000e+00> : vector<8x128xf32>
    %145 = tpu.matmul %144, %13, %cst_44 {dimension_numbers = #tpu.dot_dimension_numbers<[1], [0], [0], [1], [0, 0, 1, 1], [], []>} : vector<8x32xbf16>, vector<32x128xbf16>, vector<8x128xf32> -> vector<8x128xf32>
    %146 = arith.addf %120, %145 : vector<8x128xf32>
    %147 = math.tanh %146 : vector<8x128xf32>
    %148 = arith.negf %146 : vector<8x128xf32>
    %149 = math.exp %148 : vector<8x128xf32>
    %cst_45 = arith.constant 1.000000e+00 : f32
    %150 = vector.broadcast %cst_45 : f32 to vector<8x128xf32>
    %151 = arith.addf %150, %149 : vector<8x128xf32>
    %152 = arith.divf %150, %151 : vector<8x128xf32>
    %153 = arith.select %23, %147, %152 : vector<8x128xi1>, vector<8x128xf32>
    %154 = vector.extract_strided_slice %153 {offsets = [0, 0], sizes = [8, 32], strides = [1, 1]} : vector<8x128xf32> to vector<8x32xf32>
    %155 = vector.extract_strided_slice %153 {offsets = [0, 32], sizes = [8, 32], strides = [1, 1]} : vector<8x128xf32> to vector<8x32xf32>
    %156 = vector.extract_strided_slice %153 {offsets = [0, 64], sizes = [8, 32], strides = [1, 1]} : vector<8x128xf32> to vector<8x32xf32>
    %157 = vector.extract_strided_slice %153 {offsets = [0, 96], sizes = [8, 32], strides = [1, 1]} : vector<8x128xf32> to vector<8x32xf32>
    %158 = arith.mulf %155, %115 : vector<8x32xf32>
    %159 = arith.mulf %154, %156 : vector<8x32xf32>
    %160 = arith.addf %158, %159 : vector<8x32xf32>
    %161 = math.tanh %160 : vector<8x32xf32>
    %162 = arith.mulf %157, %161 : vector<8x32xf32>
    %c3_i32 = arith.constant 3 : i32
    %163 = arith.truncf %162 : vector<8x32xf32> to vector<8x32xbf16>
    %cst_46 = arith.constant dense<0.000000e+00> : vector<8x128xf32>
    %164 = tpu.matmul %163, %14, %cst_46 {dimension_numbers = #tpu.dot_dimension_numbers<[1], [0], [0], [1], [0, 0, 1, 1], [], []>} : vector<8x32xbf16>, vector<32x128xbf16>, vector<8x128xf32> -> vector<8x128xf32>
    %165 = arith.addf %164, %17 : vector<8x128xf32>
    %c8_i32_47 = arith.constant 8 : i32
    %166 = arith.muli %c3_i32, %c8_i32_47 : i32
    %167 = tpu.assume_multiple %166, 8 : i32
    %168 = arith.index_cast %167 : i32 to index
    %c0_48 = arith.constant 0 : index
    %169 = vector.load %arg12[%168, %c0_48] : memref<64x128xf32, #tpu.memory_space<vmem>>, vector<8x128xf32>
    %170 = arith.truncf %143 : vector<8x32xf32> to vector<8x32xbf16>
    %cst_49 = arith.constant dense<0.000000e+00> : vector<8x128xf32>
    %171 = tpu.matmul %170, %12, %cst_49 {dimension_numbers = #tpu.dot_dimension_numbers<[1], [0], [0], [1], [0, 0, 1, 1], [], []>} : vector<8x32xbf16>, vector<32x128xbf16>, vector<8x128xf32> -> vector<8x128xf32>
    %172 = arith.addf %169, %171 : vector<8x128xf32>
    %173 = math.tanh %172 : vector<8x128xf32>
    %174 = arith.negf %172 : vector<8x128xf32>
    %175 = math.exp %174 : vector<8x128xf32>
    %cst_50 = arith.constant 1.000000e+00 : f32
    %176 = vector.broadcast %cst_50 : f32 to vector<8x128xf32>
    %177 = arith.addf %176, %175 : vector<8x128xf32>
    %178 = arith.divf %176, %177 : vector<8x128xf32>
    %179 = arith.select %23, %173, %178 : vector<8x128xi1>, vector<8x128xf32>
    %180 = vector.extract_strided_slice %179 {offsets = [0, 0], sizes = [8, 32], strides = [1, 1]} : vector<8x128xf32> to vector<8x32xf32>
    %181 = vector.extract_strided_slice %179 {offsets = [0, 32], sizes = [8, 32], strides = [1, 1]} : vector<8x128xf32> to vector<8x32xf32>
    %182 = vector.extract_strided_slice %179 {offsets = [0, 64], sizes = [8, 32], strides = [1, 1]} : vector<8x128xf32> to vector<8x32xf32>
    %183 = vector.extract_strided_slice %179 {offsets = [0, 96], sizes = [8, 32], strides = [1, 1]} : vector<8x128xf32> to vector<8x32xf32>
    %184 = arith.mulf %181, %141 : vector<8x32xf32>
    %185 = arith.mulf %180, %182 : vector<8x32xf32>
    %186 = arith.addf %184, %185 : vector<8x32xf32>
    %187 = math.tanh %186 : vector<8x32xf32>
    %188 = arith.mulf %183, %187 : vector<8x32xf32>
    %189 = arith.truncf %188 : vector<8x32xf32> to vector<8x32xbf16>
    %cst_51 = arith.constant dense<0.000000e+00> : vector<8x128xf32>
    %190 = tpu.matmul %189, %13, %cst_51 {dimension_numbers = #tpu.dot_dimension_numbers<[1], [0], [0], [1], [0, 0, 1, 1], [], []>} : vector<8x32xbf16>, vector<32x128xbf16>, vector<8x128xf32> -> vector<8x128xf32>
    %191 = arith.addf %165, %190 : vector<8x128xf32>
    %192 = math.tanh %191 : vector<8x128xf32>
    %193 = arith.negf %191 : vector<8x128xf32>
    %194 = math.exp %193 : vector<8x128xf32>
    %cst_52 = arith.constant 1.000000e+00 : f32
    %195 = vector.broadcast %cst_52 : f32 to vector<8x128xf32>
    %196 = arith.addf %195, %194 : vector<8x128xf32>
    %197 = arith.divf %195, %196 : vector<8x128xf32>
    %198 = arith.select %23, %192, %197 : vector<8x128xi1>, vector<8x128xf32>
    %199 = vector.extract_strided_slice %198 {offsets = [0, 0], sizes = [8, 32], strides = [1, 1]} : vector<8x128xf32> to vector<8x32xf32>
    %200 = vector.extract_strided_slice %198 {offsets = [0, 32], sizes = [8, 32], strides = [1, 1]} : vector<8x128xf32> to vector<8x32xf32>
    %201 = vector.extract_strided_slice %198 {offsets = [0, 64], sizes = [8, 32], strides = [1, 1]} : vector<8x128xf32> to vector<8x32xf32>
    %202 = vector.extract_strided_slice %198 {offsets = [0, 96], sizes = [8, 32], strides = [1, 1]} : vector<8x128xf32> to vector<8x32xf32>
    %203 = arith.mulf %200, %160 : vector<8x32xf32>
    %204 = arith.mulf %199, %201 : vector<8x32xf32>
    %205 = arith.addf %203, %204 : vector<8x32xf32>
    %206 = math.tanh %205 : vector<8x32xf32>
    %207 = arith.mulf %202, %206 : vector<8x32xf32>
    %c4_i32 = arith.constant 4 : i32
    %208 = arith.truncf %207 : vector<8x32xf32> to vector<8x32xbf16>
    %cst_53 = arith.constant dense<0.000000e+00> : vector<8x128xf32>
    %209 = tpu.matmul %208, %14, %cst_53 {dimension_numbers = #tpu.dot_dimension_numbers<[1], [0], [0], [1], [0, 0, 1, 1], [], []>} : vector<8x32xbf16>, vector<32x128xbf16>, vector<8x128xf32> -> vector<8x128xf32>
    %210 = arith.addf %209, %17 : vector<8x128xf32>
    %c8_i32_54 = arith.constant 8 : i32
    %211 = arith.muli %c4_i32, %c8_i32_54 : i32
    %212 = tpu.assume_multiple %211, 8 : i32
    %213 = arith.index_cast %212 : i32 to index
    %c0_55 = arith.constant 0 : index
    %214 = vector.load %arg12[%213, %c0_55] : memref<64x128xf32, #tpu.memory_space<vmem>>, vector<8x128xf32>
    %215 = arith.truncf %188 : vector<8x32xf32> to vector<8x32xbf16>
    %cst_56 = arith.constant dense<0.000000e+00> : vector<8x128xf32>
    %216 = tpu.matmul %215, %12, %cst_56 {dimension_numbers = #tpu.dot_dimension_numbers<[1], [0], [0], [1], [0, 0, 1, 1], [], []>} : vector<8x32xbf16>, vector<32x128xbf16>, vector<8x128xf32> -> vector<8x128xf32>
    %217 = arith.addf %214, %216 : vector<8x128xf32>
    %218 = math.tanh %217 : vector<8x128xf32>
    %219 = arith.negf %217 : vector<8x128xf32>
    %220 = math.exp %219 : vector<8x128xf32>
    %cst_57 = arith.constant 1.000000e+00 : f32
    %221 = vector.broadcast %cst_57 : f32 to vector<8x128xf32>
    %222 = arith.addf %221, %220 : vector<8x128xf32>
    %223 = arith.divf %221, %222 : vector<8x128xf32>
    %224 = arith.select %23, %218, %223 : vector<8x128xi1>, vector<8x128xf32>
    %225 = vector.extract_strided_slice %224 {offsets = [0, 0], sizes = [8, 32], strides = [1, 1]} : vector<8x128xf32> to vector<8x32xf32>
    %226 = vector.extract_strided_slice %224 {offsets = [0, 32], sizes = [8, 32], strides = [1, 1]} : vector<8x128xf32> to vector<8x32xf32>
    %227 = vector.extract_strided_slice %224 {offsets = [0, 64], sizes = [8, 32], strides = [1, 1]} : vector<8x128xf32> to vector<8x32xf32>
    %228 = vector.extract_strided_slice %224 {offsets = [0, 96], sizes = [8, 32], strides = [1, 1]} : vector<8x128xf32> to vector<8x32xf32>
    %229 = arith.mulf %226, %186 : vector<8x32xf32>
    %230 = arith.mulf %225, %227 : vector<8x32xf32>
    %231 = arith.addf %229, %230 : vector<8x32xf32>
    %232 = math.tanh %231 : vector<8x32xf32>
    %233 = arith.mulf %228, %232 : vector<8x32xf32>
    %234 = arith.truncf %233 : vector<8x32xf32> to vector<8x32xbf16>
    %cst_58 = arith.constant dense<0.000000e+00> : vector<8x128xf32>
    %235 = tpu.matmul %234, %13, %cst_58 {dimension_numbers = #tpu.dot_dimension_numbers<[1], [0], [0], [1], [0, 0, 1, 1], [], []>} : vector<8x32xbf16>, vector<32x128xbf16>, vector<8x128xf32> -> vector<8x128xf32>
    %236 = arith.addf %210, %235 : vector<8x128xf32>
    %237 = math.tanh %236 : vector<8x128xf32>
    %238 = arith.negf %236 : vector<8x128xf32>
    %239 = math.exp %238 : vector<8x128xf32>
    %cst_59 = arith.constant 1.000000e+00 : f32
    %240 = vector.broadcast %cst_59 : f32 to vector<8x128xf32>
    %241 = arith.addf %240, %239 : vector<8x128xf32>
    %242 = arith.divf %240, %241 : vector<8x128xf32>
    %243 = arith.select %23, %237, %242 : vector<8x128xi1>, vector<8x128xf32>
    %244 = vector.extract_strided_slice %243 {offsets = [0, 0], sizes = [8, 32], strides = [1, 1]} : vector<8x128xf32> to vector<8x32xf32>
    %245 = vector.extract_strided_slice %243 {offsets = [0, 32], sizes = [8, 32], strides = [1, 1]} : vector<8x128xf32> to vector<8x32xf32>
    %246 = vector.extract_strided_slice %243 {offsets = [0, 64], sizes = [8, 32], strides = [1, 1]} : vector<8x128xf32> to vector<8x32xf32>
    %247 = vector.extract_strided_slice %243 {offsets = [0, 96], sizes = [8, 32], strides = [1, 1]} : vector<8x128xf32> to vector<8x32xf32>
    %248 = arith.mulf %245, %205 : vector<8x32xf32>
    %249 = arith.mulf %244, %246 : vector<8x32xf32>
    %250 = arith.addf %248, %249 : vector<8x32xf32>
    %251 = math.tanh %250 : vector<8x32xf32>
    %252 = arith.mulf %247, %251 : vector<8x32xf32>
    %c5_i32 = arith.constant 5 : i32
    %253 = arith.truncf %252 : vector<8x32xf32> to vector<8x32xbf16>
    %cst_60 = arith.constant dense<0.000000e+00> : vector<8x128xf32>
    %254 = tpu.matmul %253, %14, %cst_60 {dimension_numbers = #tpu.dot_dimension_numbers<[1], [0], [0], [1], [0, 0, 1, 1], [], []>} : vector<8x32xbf16>, vector<32x128xbf16>, vector<8x128xf32> -> vector<8x128xf32>
    %255 = arith.addf %254, %17 : vector<8x128xf32>
    %c8_i32_61 = arith.constant 8 : i32
    %256 = arith.muli %c5_i32, %c8_i32_61 : i32
    %257 = tpu.assume_multiple %256, 8 : i32
    %258 = arith.index_cast %257 : i32 to index
    %c0_62 = arith.constant 0 : index
    %259 = vector.load %arg12[%258, %c0_62] : memref<64x128xf32, #tpu.memory_space<vmem>>, vector<8x128xf32>
    %260 = arith.truncf %233 : vector<8x32xf32> to vector<8x32xbf16>
    %cst_63 = arith.constant dense<0.000000e+00> : vector<8x128xf32>
    %261 = tpu.matmul %260, %12, %cst_63 {dimension_numbers = #tpu.dot_dimension_numbers<[1], [0], [0], [1], [0, 0, 1, 1], [], []>} : vector<8x32xbf16>, vector<32x128xbf16>, vector<8x128xf32> -> vector<8x128xf32>
    %262 = arith.addf %259, %261 : vector<8x128xf32>
    %263 = math.tanh %262 : vector<8x128xf32>
    %264 = arith.negf %262 : vector<8x128xf32>
    %265 = math.exp %264 : vector<8x128xf32>
    %cst_64 = arith.constant 1.000000e+00 : f32
    %266 = vector.broadcast %cst_64 : f32 to vector<8x128xf32>
    %267 = arith.addf %266, %265 : vector<8x128xf32>
    %268 = arith.divf %266, %267 : vector<8x128xf32>
    %269 = arith.select %23, %263, %268 : vector<8x128xi1>, vector<8x128xf32>
    %270 = vector.extract_strided_slice %269 {offsets = [0, 0], sizes = [8, 32], strides = [1, 1]} : vector<8x128xf32> to vector<8x32xf32>
    %271 = vector.extract_strided_slice %269 {offsets = [0, 32], sizes = [8, 32], strides = [1, 1]} : vector<8x128xf32> to vector<8x32xf32>
    %272 = vector.extract_strided_slice %269 {offsets = [0, 64], sizes = [8, 32], strides = [1, 1]} : vector<8x128xf32> to vector<8x32xf32>
    %273 = vector.extract_strided_slice %269 {offsets = [0, 96], sizes = [8, 32], strides = [1, 1]} : vector<8x128xf32> to vector<8x32xf32>
    %274 = arith.mulf %271, %231 : vector<8x32xf32>
    %275 = arith.mulf %270, %272 : vector<8x32xf32>
    %276 = arith.addf %274, %275 : vector<8x32xf32>
    %277 = math.tanh %276 : vector<8x32xf32>
    %278 = arith.mulf %273, %277 : vector<8x32xf32>
    %279 = arith.truncf %278 : vector<8x32xf32> to vector<8x32xbf16>
    %cst_65 = arith.constant dense<0.000000e+00> : vector<8x128xf32>
    %280 = tpu.matmul %279, %13, %cst_65 {dimension_numbers = #tpu.dot_dimension_numbers<[1], [0], [0], [1], [0, 0, 1, 1], [], []>} : vector<8x32xbf16>, vector<32x128xbf16>, vector<8x128xf32> -> vector<8x128xf32>
    %281 = arith.addf %255, %280 : vector<8x128xf32>
    %282 = math.tanh %281 : vector<8x128xf32>
    %283 = arith.negf %281 : vector<8x128xf32>
    %284 = math.exp %283 : vector<8x128xf32>
    %cst_66 = arith.constant 1.000000e+00 : f32
    %285 = vector.broadcast %cst_66 : f32 to vector<8x128xf32>
    %286 = arith.addf %285, %284 : vector<8x128xf32>
    %287 = arith.divf %285, %286 : vector<8x128xf32>
    %288 = arith.select %23, %282, %287 : vector<8x128xi1>, vector<8x128xf32>
    %289 = vector.extract_strided_slice %288 {offsets = [0, 0], sizes = [8, 32], strides = [1, 1]} : vector<8x128xf32> to vector<8x32xf32>
    %290 = vector.extract_strided_slice %288 {offsets = [0, 32], sizes = [8, 32], strides = [1, 1]} : vector<8x128xf32> to vector<8x32xf32>
    %291 = vector.extract_strided_slice %288 {offsets = [0, 64], sizes = [8, 32], strides = [1, 1]} : vector<8x128xf32> to vector<8x32xf32>
    %292 = vector.extract_strided_slice %288 {offsets = [0, 96], sizes = [8, 32], strides = [1, 1]} : vector<8x128xf32> to vector<8x32xf32>
    %293 = arith.mulf %290, %250 : vector<8x32xf32>
    %294 = arith.mulf %289, %291 : vector<8x32xf32>
    %295 = arith.addf %293, %294 : vector<8x32xf32>
    %296 = math.tanh %295 : vector<8x32xf32>
    %297 = arith.mulf %292, %296 : vector<8x32xf32>
    %c6_i32 = arith.constant 6 : i32
    %298 = arith.truncf %297 : vector<8x32xf32> to vector<8x32xbf16>
    %cst_67 = arith.constant dense<0.000000e+00> : vector<8x128xf32>
    %299 = tpu.matmul %298, %14, %cst_67 {dimension_numbers = #tpu.dot_dimension_numbers<[1], [0], [0], [1], [0, 0, 1, 1], [], []>} : vector<8x32xbf16>, vector<32x128xbf16>, vector<8x128xf32> -> vector<8x128xf32>
    %300 = arith.addf %299, %17 : vector<8x128xf32>
    %c8_i32_68 = arith.constant 8 : i32
    %301 = arith.muli %c6_i32, %c8_i32_68 : i32
    %302 = tpu.assume_multiple %301, 8 : i32
    %303 = arith.index_cast %302 : i32 to index
    %c0_69 = arith.constant 0 : index
    %304 = vector.load %arg12[%303, %c0_69] : memref<64x128xf32, #tpu.memory_space<vmem>>, vector<8x128xf32>
    %305 = arith.truncf %278 : vector<8x32xf32> to vector<8x32xbf16>
    %cst_70 = arith.constant dense<0.000000e+00> : vector<8x128xf32>
    %306 = tpu.matmul %305, %12, %cst_70 {dimension_numbers = #tpu.dot_dimension_numbers<[1], [0], [0], [1], [0, 0, 1, 1], [], []>} : vector<8x32xbf16>, vector<32x128xbf16>, vector<8x128xf32> -> vector<8x128xf32>
    %307 = arith.addf %304, %306 : vector<8x128xf32>
    %308 = math.tanh %307 : vector<8x128xf32>
    %309 = arith.negf %307 : vector<8x128xf32>
    %310 = math.exp %309 : vector<8x128xf32>
    %cst_71 = arith.constant 1.000000e+00 : f32
    %311 = vector.broadcast %cst_71 : f32 to vector<8x128xf32>
    %312 = arith.addf %311, %310 : vector<8x128xf32>
    %313 = arith.divf %311, %312 : vector<8x128xf32>
    %314 = arith.select %23, %308, %313 : vector<8x128xi1>, vector<8x128xf32>
    %315 = vector.extract_strided_slice %314 {offsets = [0, 0], sizes = [8, 32], strides = [1, 1]} : vector<8x128xf32> to vector<8x32xf32>
    %316 = vector.extract_strided_slice %314 {offsets = [0, 32], sizes = [8, 32], strides = [1, 1]} : vector<8x128xf32> to vector<8x32xf32>
    %317 = vector.extract_strided_slice %314 {offsets = [0, 64], sizes = [8, 32], strides = [1, 1]} : vector<8x128xf32> to vector<8x32xf32>
    %318 = vector.extract_strided_slice %314 {offsets = [0, 96], sizes = [8, 32], strides = [1, 1]} : vector<8x128xf32> to vector<8x32xf32>
    %319 = arith.mulf %316, %276 : vector<8x32xf32>
    %320 = arith.mulf %315, %317 : vector<8x32xf32>
    %321 = arith.addf %319, %320 : vector<8x32xf32>
    %322 = math.tanh %321 : vector<8x32xf32>
    %323 = arith.mulf %318, %322 : vector<8x32xf32>
    %324 = arith.truncf %323 : vector<8x32xf32> to vector<8x32xbf16>
    %cst_72 = arith.constant dense<0.000000e+00> : vector<8x128xf32>
    %325 = tpu.matmul %324, %13, %cst_72 {dimension_numbers = #tpu.dot_dimension_numbers<[1], [0], [0], [1], [0, 0, 1, 1], [], []>} : vector<8x32xbf16>, vector<32x128xbf16>, vector<8x128xf32> -> vector<8x128xf32>
    %326 = arith.addf %300, %325 : vector<8x128xf32>
    %327 = math.tanh %326 : vector<8x128xf32>
    %328 = arith.negf %326 : vector<8x128xf32>
    %329 = math.exp %328 : vector<8x128xf32>
    %cst_73 = arith.constant 1.000000e+00 : f32
    %330 = vector.broadcast %cst_73 : f32 to vector<8x128xf32>
    %331 = arith.addf %330, %329 : vector<8x128xf32>
    %332 = arith.divf %330, %331 : vector<8x128xf32>
    %333 = arith.select %23, %327, %332 : vector<8x128xi1>, vector<8x128xf32>
    %334 = vector.extract_strided_slice %333 {offsets = [0, 0], sizes = [8, 32], strides = [1, 1]} : vector<8x128xf32> to vector<8x32xf32>
    %335 = vector.extract_strided_slice %333 {offsets = [0, 32], sizes = [8, 32], strides = [1, 1]} : vector<8x128xf32> to vector<8x32xf32>
    %336 = vector.extract_strided_slice %333 {offsets = [0, 64], sizes = [8, 32], strides = [1, 1]} : vector<8x128xf32> to vector<8x32xf32>
    %337 = vector.extract_strided_slice %333 {offsets = [0, 96], sizes = [8, 32], strides = [1, 1]} : vector<8x128xf32> to vector<8x32xf32>
    %338 = arith.mulf %335, %295 : vector<8x32xf32>
    %339 = arith.mulf %334, %336 : vector<8x32xf32>
    %340 = arith.addf %338, %339 : vector<8x32xf32>
    %341 = math.tanh %340 : vector<8x32xf32>
    %342 = arith.mulf %337, %341 : vector<8x32xf32>
    %c7_i32 = arith.constant 7 : i32
    %343 = arith.truncf %342 : vector<8x32xf32> to vector<8x32xbf16>
    %cst_74 = arith.constant dense<0.000000e+00> : vector<8x128xf32>
    %344 = tpu.matmul %343, %14, %cst_74 {dimension_numbers = #tpu.dot_dimension_numbers<[1], [0], [0], [1], [0, 0, 1, 1], [], []>} : vector<8x32xbf16>, vector<32x128xbf16>, vector<8x128xf32> -> vector<8x128xf32>
    %345 = arith.addf %344, %17 : vector<8x128xf32>
    %c8_i32_75 = arith.constant 8 : i32
    %346 = arith.muli %c7_i32, %c8_i32_75 : i32
    %347 = tpu.assume_multiple %346, 8 : i32
    %348 = arith.index_cast %347 : i32 to index
    %c0_76 = arith.constant 0 : index
    %349 = vector.load %arg12[%348, %c0_76] : memref<64x128xf32, #tpu.memory_space<vmem>>, vector<8x128xf32>
    %350 = arith.truncf %323 : vector<8x32xf32> to vector<8x32xbf16>
    %cst_77 = arith.constant dense<0.000000e+00> : vector<8x128xf32>
    %351 = tpu.matmul %350, %12, %cst_77 {dimension_numbers = #tpu.dot_dimension_numbers<[1], [0], [0], [1], [0, 0, 1, 1], [], []>} : vector<8x32xbf16>, vector<32x128xbf16>, vector<8x128xf32> -> vector<8x128xf32>
    %352 = arith.addf %349, %351 : vector<8x128xf32>
    %353 = math.tanh %352 : vector<8x128xf32>
    %354 = arith.negf %352 : vector<8x128xf32>
    %355 = math.exp %354 : vector<8x128xf32>
    %cst_78 = arith.constant 1.000000e+00 : f32
    %356 = vector.broadcast %cst_78 : f32 to vector<8x128xf32>
    %357 = arith.addf %356, %355 : vector<8x128xf32>
    %358 = arith.divf %356, %357 : vector<8x128xf32>
    %359 = arith.select %23, %353, %358 : vector<8x128xi1>, vector<8x128xf32>
    %360 = vector.extract_strided_slice %359 {offsets = [0, 0], sizes = [8, 32], strides = [1, 1]} : vector<8x128xf32> to vector<8x32xf32>
    %361 = vector.extract_strided_slice %359 {offsets = [0, 32], sizes = [8, 32], strides = [1, 1]} : vector<8x128xf32> to vector<8x32xf32>
    %362 = vector.extract_strided_slice %359 {offsets = [0, 64], sizes = [8, 32], strides = [1, 1]} : vector<8x128xf32> to vector<8x32xf32>
    %363 = vector.extract_strided_slice %359 {offsets = [0, 96], sizes = [8, 32], strides = [1, 1]} : vector<8x128xf32> to vector<8x32xf32>
    %364 = arith.mulf %361, %321 : vector<8x32xf32>
    %365 = arith.mulf %360, %362 : vector<8x32xf32>
    %366 = arith.addf %364, %365 : vector<8x32xf32>
    %367 = math.tanh %366 : vector<8x32xf32>
    %368 = arith.mulf %363, %367 : vector<8x32xf32>
    %369 = arith.truncf %368 : vector<8x32xf32> to vector<8x32xbf16>
    %cst_79 = arith.constant dense<0.000000e+00> : vector<8x128xf32>
    %370 = tpu.matmul %369, %13, %cst_79 {dimension_numbers = #tpu.dot_dimension_numbers<[1], [0], [0], [1], [0, 0, 1, 1], [], []>} : vector<8x32xbf16>, vector<32x128xbf16>, vector<8x128xf32> -> vector<8x128xf32>
    %371 = arith.addf %345, %370 : vector<8x128xf32>
    %372 = math.tanh %371 : vector<8x128xf32>
    %373 = arith.negf %371 : vector<8x128xf32>
    %374 = math.exp %373 : vector<8x128xf32>
    %cst_80 = arith.constant 1.000000e+00 : f32
    %375 = vector.broadcast %cst_80 : f32 to vector<8x128xf32>
    %376 = arith.addf %375, %374 : vector<8x128xf32>
    %377 = arith.divf %375, %376 : vector<8x128xf32>
    %378 = arith.select %23, %372, %377 : vector<8x128xi1>, vector<8x128xf32>
    %379 = vector.extract_strided_slice %378 {offsets = [0, 0], sizes = [8, 32], strides = [1, 1]} : vector<8x128xf32> to vector<8x32xf32>
    %380 = vector.extract_strided_slice %378 {offsets = [0, 32], sizes = [8, 32], strides = [1, 1]} : vector<8x128xf32> to vector<8x32xf32>
    %381 = vector.extract_strided_slice %378 {offsets = [0, 64], sizes = [8, 32], strides = [1, 1]} : vector<8x128xf32> to vector<8x32xf32>
    %382 = vector.extract_strided_slice %378 {offsets = [0, 96], sizes = [8, 32], strides = [1, 1]} : vector<8x128xf32> to vector<8x32xf32>
    %383 = arith.mulf %380, %340 : vector<8x32xf32>
    %384 = arith.mulf %379, %381 : vector<8x32xf32>
    %385 = arith.addf %383, %384 : vector<8x32xf32>
    %386 = math.tanh %385 : vector<8x32xf32>
    %387 = arith.mulf %382, %386 : vector<8x32xf32>
    %c8_i32_81 = arith.constant 8 : i32
    %c0_82 = arith.constant 0 : index
    %c0_83 = arith.constant 0 : index
    %388 = vector.load %arg13[%c0_82, %c0_83] : memref<8x32xf32, #tpu.memory_space<vmem>>, vector<8x32xf32>
    tpu.vector_store %arg13[%c0_82, %c0_83], %368 {strides = array<i32>} : memref<8x32xf32, #tpu.memory_space<vmem>>, vector<8x32xf32>,
    %c0_84 = arith.constant 0 : index
    %c0_85 = arith.constant 0 : index
    %389 = vector.load %arg14[%c0_84, %c0_85] : memref<8x32xf32, #tpu.memory_space<vmem>>, vector<8x32xf32>
    tpu.vector_store %arg14[%c0_84, %c0_85], %366 {strides = array<i32>} : memref<8x32xf32, #tpu.memory_space<vmem>>, vector<8x32xf32>,
    %c0_86 = arith.constant 0 : index
    %c0_87 = arith.constant 0 : index
    %390 = vector.load %arg15[%c0_86, %c0_87] : memref<8x32xf32, #tpu.memory_space<vmem>>, vector<8x32xf32>
    tpu.vector_store %arg15[%c0_86, %c0_87], %387 {strides = array<i32>} : memref<8x32xf32, #tpu.memory_space<vmem>>, vector<8x32xf32>,
    %c0_88 = arith.constant 0 : index
    %c0_89 = arith.constant 0 : index
    %391 = vector.load %arg16[%c0_88, %c0_89] : memref<8x32xf32, #tpu.memory_space<vmem>>, vector<8x32xf32>
    tpu.vector_store %arg16[%c0_88, %c0_89], %385 {strides = array<i32>} : memref<8x32xf32, #tpu.memory_space<vmem>>, vector<8x32xf32>,
    %c0_i32_90 = arith.constant 0 : i32
    %392 = arith.cmpi eq, %arg1, %c0_i32_90 : i32
    %393 = arith.extui %392 : i1 to i32
    %c0_i32_91 = arith.constant 0 : i32
    %394 = arith.cmpi ne, %393, %c0_i32_91 : i32
    scf.if %394 {
      %395 = arith.truncf %387 : vector<8x32xf32> to vector<8x32xbf16>
      %c0_92 = arith.constant 0 : index
      %c0_93 = arith.constant 0 : index
      %396 = vector.load %arg9[%c0_92, %c0_93] : memref<32x128xbf16, #tpu.memory_space<vmem>>, vector<32x128xbf16>
      %cst_94 = arith.constant dense<0.000000e+00> : vector<8x128xf32>
      %397 = tpu.matmul %395, %396, %cst_94 {dimension_numbers = #tpu.dot_dimension_numbers<[1], [0], [0], [1], [0, 0, 1, 1], [], []>} : vector<8x32xbf16>, vector<32x128xbf16>, vector<8x128xf32> -> vector<8x128xf32>
      %c0_95 = arith.constant 0 : index
      %c0_96 = arith.constant 0 : index
      %398 = vector.load %arg10[%c0_95, %c0_96] : memref<1x128xf32, #tpu.memory_space<vmem>>, vector<1x128xf32>
      %399 = vector.broadcast %398 : vector<1x128xf32> to vector<8x128xf32>
      %400 = arith.addf %397, %399 : vector<8x128xf32>
      %c0_97 = arith.constant 0 : index
      %c0_98 = arith.constant 0 : index
      %401 = vector.load %arg11[%c0_97, %c0_98] : memref<8x128xf32, #tpu.memory_space<vmem>>, vector<8x128xf32>
      tpu.vector_store %arg11[%c0_97, %c0_98], %400 {strides = array<i32>} : memref<8x128xf32, #tpu.memory_space<vmem>>, vector<8x128xf32>,
    } else {
    }
    return
  }
  func.func @transform_0(%arg0: i32, %arg1: i32) -> (i32, i32, i32) {
    %c0_i32 = arith.constant 0 : i32
    %c0_i32_0 = arith.constant 0 : i32
    return %arg1, %arg0, %c0_i32 : i32, i32, i32
  }
  func.func @transform_1(%arg0: i32, %arg1: i32) -> (i32, i32) {
    %c0_i32 = arith.constant 0 : i32
    %c0_i32_0 = arith.constant 0 : i32
    %c0_i32_1 = arith.constant 0 : i32
    return %c0_i32, %c0_i32_0 : i32, i32
  }
  func.func @transform_2(%arg0: i32, %arg1: i32) -> (i32, i32) {
    %c0_i32 = arith.constant 0 : i32
    %c0_i32_0 = arith.constant 0 : i32
    %c0_i32_1 = arith.constant 0 : i32
    return %c0_i32, %c0_i32_0 : i32, i32
  }
  func.func @transform_3(%arg0: i32, %arg1: i32) -> (i32, i32) {
    %c0_i32 = arith.constant 0 : i32
    %c0_i32_0 = arith.constant 0 : i32
    %c0_i32_1 = arith.constant 0 : i32
    return %c0_i32, %c0_i32_0 : i32, i32
  }
  func.func @transform_4(%arg0: i32, %arg1: i32) -> (i32, i32) {
    %c0_i32 = arith.constant 0 : i32
    %c0_i32_0 = arith.constant 0 : i32
    %c0_i32_1 = arith.constant 0 : i32
    return %c0_i32, %c0_i32_0 : i32, i32
  }
  func.func @transform_5(%arg0: i32, %arg1: i32) -> (i32, i32) {
    %c0_i32 = arith.constant 0 : i32
    %c0_i32_0 = arith.constant 0 : i32
    %c0_i32_1 = arith.constant 0 : i32
    return %c0_i32, %c0_i32_0 : i32, i32
  }
  func.func @transform_6(%arg0: i32, %arg1: i32) -> (i32, i32) {
    %c0_i32 = arith.constant 0 : i32
    %c0_i32_0 = arith.constant 0 : i32
    %c0_i32_1 = arith.constant 0 : i32
    return %c0_i32, %c0_i32_0 : i32, i32
  }
  func.func @transform_7(%arg0: i32, %arg1: i32) -> (i32, i32) {
    %c0_i32 = arith.constant 0 : i32
    %c0_i32_0 = arith.constant 0 : i32
    %c0_i32_1 = arith.constant 0 : i32
    return %c0_i32, %c0_i32_0 : i32, i32
  }
  func.func @transform_8(%arg0: i32, %arg1: i32) -> (i32, i32) {
    %c0_i32 = arith.constant 0 : i32
    %c0_i32_0 = arith.constant 0 : i32
    %c0_i32_1 = arith.constant 0 : i32
    return %c0_i32, %c0_i32_0 : i32, i32
  }
  func.func @transform_9(%arg0: i32, %arg1: i32) -> (i32, i32) {
    %c0_i32 = arith.constant 0 : i32
    %c0_i32_0 = arith.constant 0 : i32
    return %arg0, %c0_i32 : i32, i32
  }
}

</mosaic_0001>

<llo_original>
// kernel: tpu_custom_call.1
$region0: #{tpu_custom_call.1}
  #allocation0 [shape = 'u32[]', space=smem, size = 0x4, offset = 0x4, fixed_abs, tag = 'smem constant byte address 0x4 - core index']
  #allocation1 [shape = 'u32[144,128]{1,0:T(1,128)}', space=vmem, size = 0x12000, scoped, tag = 'internal scratch']
  #allocation2 [shape = 'f32[64,128]{1,0:T(8,128)}', space=vmem, size = 0x8000, scoped, tag = 'scratch operand']
  #allocation3 [shape = 'f32[8,32]{1,0:T(8,128)}', space=vmem, size = 0x1000, scoped, tag = 'scratch operand']
  #allocation4 [shape = 'f32[8,32]{1,0:T(8,128)}', space=vmem, size = 0x1000, scoped, tag = 'scratch operand']
  #allocation5 [shape = 'f32[8,32]{1,0:T(8,128)}', space=vmem, size = 0x1000, scoped, tag = 'scratch operand']
  #allocation6 [shape = 'f32[8,32]{1,0:T(8,128)}', space=vmem, size = 0x1000, scoped, tag = 'scratch operand']
  %s0 = inlined_call_operand.hbm [shape: f32[8,8,16], index: 0, kind: input, shape index: {}]
  %s1 = inlined_call_operand.hbm [shape: bf16[16,128], index: 1, kind: input, shape index: {}]
  %s2 = inlined_call_operand.vmem [shape: f32[1,128], index: 2, kind: input, shape index: {}]
  %s3 = inlined_call_operand.hbm [shape: bf16[32,128], index: 3, kind: input, shape index: {}]
  %s4 = inlined_call_operand.hbm [shape: bf16[32,128], index: 4, kind: input, shape index: {}]
  %s5 = inlined_call_operand.vmem [shape: bf16[32,128], index: 5, kind: input, shape index: {}]
  %s6 = inlined_call_operand.vmem [shape: f32[1,128], index: 6, kind: input, shape index: {}]
  %s7 = inlined_call_operand.hbm [shape: bf16[32,128], index: 7, kind: input, shape index: {}]
  %s8 = inlined_call_operand.vmem [shape: f32[1,128], index: 8, kind: input, shape index: {}]
  %s9 = inlined_call_operand.hbm [shape: f32[8,128], index: 9, kind: output, shape index: {}]
  %s10 = sld [smem:[#allocation0]]
  $region74: #{tpu_custom_call.1} parent=0
    _
  %s12 = ssub.s32 1, %s10
  %s13 = scalar_select 0, %s12, %s10
  $region1: #{tpu_custom_call.1} parent=0
    #allocation7 [shape = 'u8[32768]{0}', space=vmem, size = 0x8000, scoped, tag = 'input window, operand 0, single buffered']
    #allocation8 [shape = 's32[1]{0}', space=sflag, size = 0x4, scoped, tag = 'scoped memory for tpu_custom_call.1']
    #allocation9 [shape = 's32[1]{0}', space=sflag, size = 0x4, scoped, tag = 'scoped memory for tpu_custom_call.1']
    #allocation10 [shape = 'u8[4096]{0}', space=vmem, size = 0x1000, scoped, tag = 'input window, operand 1, single buffered']
    #allocation11 [shape = 's32[1]{0}', space=sflag, size = 0x4, scoped, tag = 'scoped memory for tpu_custom_call.1']
    #allocation12 [shape = 'u8[8192]{0}', space=vmem, size = 0x2000, scoped, tag = 'input window, operand 3, single buffered']
    #allocation13 [shape = 'u8[8192]{0}', space=vmem, size = 0x2000, scoped, tag = 'input window, operand 4, single buffered']
    #allocation14 [shape = 's32[1]{0}', space=sflag, size = 0x4, scoped, tag = 'scoped memory for tpu_custom_call.1']
    #allocation15 [shape = 'u8[8192]{0}', space=vmem, size = 0x2000, scoped, tag = 'input window, operand 7, single buffered']
    #allocation16 [shape = 'u8[4096]{0}', space=vmem, size = 0x1000, scoped, tag = 'output window, operand 0, single buffered']
    %14 = vsyncpa [#allocation8], 0
    %15 = vsyncpa [#allocation11], 0
    %16 = vsyncpa [#allocation14], 0
    %17 = vsyncpa [#allocation9], 0
    // Predicated region
    $region2: #{tpu_custom_call.1} parent=1 // pred_check
      _
    $region3: #{tpu_custom_call.1} parent=1 // pred_check_branch
      %19 = sbr.rel (0) target = $region5
    $region4: #{tpu_custom_call.1} parent=1 // pred_region
      %s21 = ssub.s32 1024, 1024
      %22 = vsyncadd [#allocation8], %s21
      %s23 = sshll.u32 [#allocation7], 4
      %s24 = int_to_ptr.vmem [resolvable:$true] %s23
      %29 = dma.hbm_to_vmem [thread:$0]  %s0, 1024, %s24, [#allocation8], 128, 128, 8
    $region5: #{tpu_custom_call.1} parent=1 // pred_fallthru
      _
    // Predicated region
    $region6: #{tpu_custom_call.1} parent=1 // pred_check
      _
    $region7: #{tpu_custom_call.1} parent=1 // pred_check_branch
      %31 = sbr.rel (0) target = $region9
    $region8: #{tpu_custom_call.1} parent=1 // pred_region
      %s33 = ssub.s32 128, 128
      %34 = vsyncadd [#allocation11], %s33
      %s35 = sshll.u32 [#allocation10], 4
      %s36 = int_to_ptr.vmem [resolvable:$true] %s35
      %41 = dma.hbm_to_vmem [thread:$0]  %s1, 128, %s36, [#allocation11], 64, 64, 4
    $region9: #{tpu_custom_call.1} parent=1 // pred_fallthru
      _
    // Predicated region
    $region10: #{tpu_custom_call.1} parent=1 // pred_check
      _
    $region11: #{tpu_custom_call.1} parent=1 // pred_check_branch
      %43 = sbr.rel (0) target = $region13
    $region12: #{tpu_custom_call.1} parent=1 // pred_region
      _
    $region13: #{tpu_custom_call.1} parent=1 // pred_fallthru
      _
    // Predicated region
    $region14: #{tpu_custom_call.1} parent=1 // pred_check
      _
    $region15: #{tpu_custom_call.1} parent=1 // pred_check_branch
      %45 = sbr.rel (0) target = $region17
    $region16: #{tpu_custom_call.1} parent=1 // pred_region
      %s47 = ssub.s32 256, 256
      %48 = vsyncadd [#allocation11], %s47
      %s49 = sshll.u32 [#allocation12], 4
      %s50 = int_to_ptr.vmem [resolvable:$true] %s49
      %55 = dma.hbm_to_vmem [thread:$0]  %s3, 256, %s50, [#allocation11], 64, 64, 4
    $region17: #{tpu_custom_call.1} parent=1 // pred_fallthru
      _
    // Predicated region
    $region18: #{tpu_custom_call.1} parent=1 // pred_check
      _
    $region19: #{tpu_custom_call.1} parent=1 // pred_check_branch
      %57 = sbr.rel (0) target = $region21
    $region20: #{tpu_custom_call.1} parent=1 // pred_region
      %s59 = ssub.s32 256, 256
      %60 = vsyncadd [#allocation14], %s59
      %s61 = sshll.u32 [#allocation13], 4
      %s62 = int_to_ptr.vmem [resolvable:$true] %s61
      %67 = dma.hbm_to_vmem [thread:$0]  %s4, 256, %s62, [#allocation14], 64, 64, 4
    $region21: #{tpu_custom_call.1} parent=1 // pred_fallthru
      _
    // Predicated region
    $region22: #{tpu_custom_call.1} parent=1 // pred_check
      _
    $region23: #{tpu_custom_call.1} parent=1 // pred_check_branch
      %69 = sbr.rel (0) target = $region25
    $region24: #{tpu_custom_call.1} parent=1 // pred_region
      _
    $region25: #{tpu_custom_call.1} parent=1 // pred_fallthru
      _
    // Predicated region
    $region26: #{tpu_custom_call.1} parent=1 // pred_check
      _
    $region27: #{tpu_custom_call.1} parent=1 // pred_check_branch
      %71 = sbr.rel (0) target = $region29
    $region28: #{tpu_custom_call.1} parent=1 // pred_region
      _
    $region29: #{tpu_custom_call.1} parent=1 // pred_fallthru
      _
    // Predicated region
    $region30: #{tpu_custom_call.1} parent=1 // pred_check
      _
    $region31: #{tpu_custom_call.1} parent=1 // pred_check_branch
      %73 = sbr.rel (0) target = $region33
    $region32: #{tpu_custom_call.1} parent=1 // pred_region
      %s75 = ssub.s32 256, 256
      %76 = vsyncadd [#allocation14], %s75
      %s77 = sshll.u32 [#allocation15], 4
      %s78 = int_to_ptr.vmem [resolvable:$true] %s77
      %83 = dma.hbm_to_vmem [thread:$0]  %s7, 256, %s78, [#allocation14], 64, 64, 4
    $region33: #{tpu_custom_call.1} parent=1 // pred_fallthru
      _
    // Predicated region
    $region34: #{tpu_custom_call.1} parent=1 // pred_check
      _
    $region35: #{tpu_custom_call.1} parent=1 // pred_check_branch
      %85 = sbr.rel (0) target = $region37
    $region36: #{tpu_custom_call.1} parent=1 // pred_region
      _
    $region37: #{tpu_custom_call.1} parent=1 // pred_fallthru
      _
    // Predicated region
    $region38: #{tpu_custom_call.1} parent=1 // pred_check
      _
    $region39: #{tpu_custom_call.1} parent=1 // pred_check_branch
      %87 = sbr.rel (0) target = $region41
    $region40: #{tpu_custom_call.1} parent=1 // pred_region
      %88 = dma.done [#allocation8], 1024
    $region41: #{tpu_custom_call.1} parent=1 // pred_fallthru
      _
    // Predicated region
    $region42: #{tpu_custom_call.1} parent=1 // pred_check
      _
    $region43: #{tpu_custom_call.1} parent=1 // pred_check_branch
      %90 = sbr.rel (0) target = $region45
    $region44: #{tpu_custom_call.1} parent=1 // pred_region
      %91 = dma.done [#allocation11], 128
    $region45: #{tpu_custom_call.1} parent=1 // pred_fallthru
      _
    // Predicated region
    $region46: #{tpu_custom_call.1} parent=1 // pred_check
      _
    $region47: #{tpu_custom_call.1} parent=1 // pred_check_branch
      %93 = sbr.rel (0) target = $region49
    $region48: #{tpu_custom_call.1} parent=1 // pred_region
      %94 = dma.done [#allocation11], 256
    $region49: #{tpu_custom_call.1} parent=1 // pred_fallthru
      _
    // Predicated region
    $region50: #{tpu_custom_call.1} parent=1 // pred_check
      _
    $region51: #{tpu_custom_call.1} parent=1 // pred_check_branch
      %96 = sbr.rel (0) target = $region53
    $region52: #{tpu_custom_call.1} parent=1 // pred_region
      %97 = dma.done [#allocation14], 256
    $region53: #{tpu_custom_call.1} parent=1 // pred_fallthru
      _
    // Predicated region
    $region54: #{tpu_custom_call.1} parent=1 // pred_check
      _
    $region55: #{tpu_custom_call.1} parent=1 // pred_check_branch
      %99 = sbr.rel (0) target = $region57
    $region56: #{tpu_custom_call.1} parent=1 // pred_region
      %100 = dma.done [#allocation14], 256
    $region57: #{tpu_custom_call.1} parent=1 // pred_fallthru
      _
    %p102 = scmp.eq.s32.totalorder 0, 0
    // Predicated region
    $region58: #{tpu_custom_call.1} parent=1 // pred_check
      %p103 = pneg %p102
    $region59: #{tpu_custom_call.1} parent=1 // pred_check_branch
      %105 = sbr.rel (%p103) target = $region61
    $region60: #{tpu_custom_call.1} parent=1 // pred_region
      %vm106 = vcmask 261120
      %107 = vst.msk [vmem:[#allocation3] sm:$0xff] %vm106, 0.0
      %108 = vst.msk [vmem:[#allocation4] sm:$0xff] %vm106, 0.0
      %109 = vst.msk [vmem:[#allocation5] sm:$0xff] %vm106, 0.0
      %110 = vst.msk [vmem:[#allocation6] sm:$0xff] %vm106, 0.0
    $region61: #{tpu_custom_call.1} parent=1 // pred_fallthru
      _
    %v111 = vld [vmem:[#allocation7] sm:$0xff]
    %v112 = vld [vmem:[#allocation7 + $0x8] sm:$0xff]
    %v113 = vld [vmem:[#allocation7 + $0x10] sm:$0xff]
    %v114 = vld [vmem:[#allocation7 + $0x18] sm:$0xff]
    %v115 = vld [vmem:[#allocation7 + $0x20] sm:$0xff]
    %v116 = vld [vmem:[#allocation7 + $0x28] sm:$0xff]
    %v117 = vld [vmem:[#allocation7 + $0x30] sm:$0xff]
    %v118 = vld [vmem:[#allocation7 + $0x38] sm:$0xff]
    %v119 = vpack.c.bf16 %v112, %v111
    %v120 = vpack.c.bf16 %v114, %v113
    %v121 = vpack.c.bf16 %v116, %v115
    %v122 = vpack.c.bf16 %v118, %v117
    %v123 = vld [vmem:[#allocation10] sm:$0xf]
    %v124 = vld [vmem:[#allocation10 + $0x4] sm:$0xf]
    %v125 = vld [vmem:[%s2] sm:$0x1]
    %v127 = vlaneseq
    %v128 = vshrl.u32 %v127, 7
    %v129 = vsub.s32 0, %v128
    %v130 = vrot.slane %v125, %v129
    %v134 = vunpack.c.l.b16 %v123
    %v135 = vunpack.c.l.b16 %v124
    %v136 = vpack.c.b16 %v135, %v134
    %vm138 = vcmask 130048
    %v140 = vsel %vm138, %v119, 0
    %v143 = vsel %vm138, %v120, 0
    %v146 = vsel %vm138, %v121, 0
    %v149 = vsel %vm138, %v122, 0
    %151 = vmatprep.subr.bf16.mxu0 0
    %152 = vmatpush1.bf16.msra.mxu0 %v136
    %153 = vmatprep.subr.bf16.mxu0 0
    %154 = vmatpush1.bf16.msra.mxu0 0
    %155 = vmatprep.subr.bf16.mxu0 0
    %156 = vmatpush1.bf16.msra.mxu0 0
    %157 = vmatprep.subr.bf16.mxu0 0
    %158 = vmatpush1.bf16.msra.mxu0 0
    %159 = vmatprep.subr.bf16.mxu0 0
    %160 = vmatpush1.bf16.msra.mxu0 0
    %161 = vmatprep.subr.bf16.mxu0 0
    %162 = vmatpush1.bf16.msra.mxu0 0
    %163 = vmatprep.subr.bf16.mxu0 0
    %164 = vmatpush1.bf16.msra.mxu0 0
    %165 = vmatprep.subr.bf16.mxu0 0
    %166 = vmatpush1.bf16.msra.mxu0 0
    %167 = vmatprep.subr.bf16.mxu0 0
    %168 = vmatpush1.bf16.msra.mxu0 0
    %169 = vmatprep.subr.bf16.mxu0 0
    %170 = vmatpush1.bf16.msra.mxu0 0
    %171 = vmatprep.subr.bf16.mxu0 0
    %172 = vmatpush1.bf16.msra.mxu0 0
    %173 = vmatprep.subr.bf16.mxu0 0
    %174 = vmatpush1.bf16.msra.mxu0 0
    %175 = vmatprep.subr.bf16.mxu0 0
    %176 = vmatpush1.bf16.msra.mxu0 0
    %177 = vmatprep.subr.bf16.mxu0 0
    %178 = vmatpush1.bf16.msra.mxu0 0
    %179 = vmatprep.subr.bf16.mxu0 0
    %180 = vmatpush1.bf16.msra.mxu0 0
    %181 = vmatprep.subr.bf16.mxu0 0
    %182 = vmatpush1.bf16.msra.mxu0 0
    %183 = vmatprep.mubr.bf16.mxu0 0
    %184 = vmatmul.mubr.bf16.gmra.mrb[0].mxu0 %v140
    %v185 = vpop.f32.mrb[0].mxu0
    %v186 = vadd.f32 %v130, %v185
    %v187 = vpop.f32.mrb[0].mxu0
    %v188 = vpop.f32.mrb[0].mxu0
    %v189 = vadd.f32 %v130, %v188
    %v190 = vpop.f32.mrb[0].mxu0
    %191 = vmatprep.mubr.bf16.mxu0 0
    %192 = vmatmul.mubr.bf16.gmra.mrb[0].mxu0 %v143
    %v193 = vpop.f32.mrb[0].mxu0
    %v194 = vadd.f32 %v130, %v193
    %v195 = vpop.f32.mrb[0].mxu0
    %v196 = vpop.f32.mrb[0].mxu0
    %v197 = vadd.f32 %v130, %v196
    %v198 = vpop.f32.mrb[0].mxu0
    %199 = vmatprep.mubr.bf16.mxu0 0
    %200 = vmatmul.mubr.bf16.gmra.mrb[0].mxu0 %v146
    %v201 = vpop.f32.mrb[0].mxu0
    %v202 = vadd.f32 %v130, %v201
    %v203 = vpop.f32.mrb[0].mxu0
    %v204 = vpop.f32.mrb[0].mxu0
    %v205 = vadd.f32 %v130, %v204
    %v206 = vpop.f32.mrb[0].mxu0
    %207 = vmatprep.mubr.bf16.mxu0 0
    %208 = vmatmul.mubr.bf16.gmra.mrb[0].mxu0 %v149
    %v209 = vpop.f32.mrb[0].mxu0
    %v210 = vadd.f32 %v130, %v209
    %v211 = vpop.f32.mrb[0].mxu0
    %v212 = vpop.f32.mrb[0].mxu0
    %v213 = vadd.f32 %v130, %v212
    %v214 = vpop.f32.mrb[0].mxu0
    %215 = vdwg.mxu0
    %216 = vst [vmem:[#allocation2] sm:$0xff] %v186
    %217 = vst [vmem:[#allocation2 + $0x8] sm:$0xff] %v189
    %218 = vst [vmem:[#allocation2 + $0x10] sm:$0xff] %v194
    %219 = vst [vmem:[#allocation2 + $0x18] sm:$0xff] %v197
    %220 = vst [vmem:[#allocation2 + $0x20] sm:$0xff] %v202
    %221 = vst [vmem:[#allocation2 + $0x28] sm:$0xff] %v205
    %222 = vst [vmem:[#allocation2 + $0x30] sm:$0xff] %v210
    %223 = vst [vmem:[#allocation2 + $0x38] sm:$0xff] %v213
    %v224 = vld [vmem:[#allocation12] sm:$0xf]
    %v225 = vld [vmem:[#allocation12 + $0x4] sm:$0xf]
    %v226 = vld [vmem:[#allocation12 + $0x8] sm:$0xf]
    %v227 = vld [vmem:[#allocation12 + $0xc] sm:$0xf]
    %v228 = vld [vmem:[#allocation13] sm:$0xf]
    %v229 = vld [vmem:[#allocation13 + $0x4] sm:$0xf]
    %v230 = vld [vmem:[#allocation13 + $0x8] sm:$0xf]
    %v231 = vld [vmem:[#allocation13 + $0xc] sm:$0xf]
    %v232 = vld [vmem:[%s5] sm:$0xf]
    %v233 = vld [vmem:[%s5 + $0x4] sm:$0xf]
    %v234 = vld [vmem:[%s5 + $0x8] sm:$0xf]
    %v235 = vld [vmem:[%s5 + $0xc] sm:$0xf]
    %v236 = vld [vmem:[%s6] sm:$0x1]
    %v238 = vlaneseq
    %v239 = vshrl.u32 %v238, 7
    %v240 = vsub.s32 0, %v239
    %v241 = vrot.slane %v236, %v240
    %v243 = vlaneseq
    %v244 = vand.u32 %v243, 127
    %vm245 = vcmp.ge.s32.totalorder %v244, 64
    %vm246 = vcmp.lt.s32.totalorder %v244, 96
    %vm247 = vmand %vm245, %vm246
    %v248 = vld [vmem:[#allocation3] sm:$0xff]
    %v249 = vld [vmem:[#allocation4] sm:$0xff]
    %v250 = vld [vmem:[#allocation5] sm:$0xff]
    %v251 = vld [vmem:[#allocation6] sm:$0xff]
    %v252 = vpack.c.bf16 %v250, %v250
    %v257 = vunpack.c.l.b16 %v232
    %v258 = vunpack.c.l.b16 %v233
    %v259 = vunpack.c.l.b16 %v234
    %v260 = vunpack.c.l.b16 %v235
    %v261 = vpack.c.b16 %v258, %v257
    %v262 = vpack.c.b16 %v260, %v259
    %vm265 = vcmask 261120
    %v267 = vsel %vm265, %v252, 0
    %269 = vmatprep.subr.bf16.mxu0 0
    %270 = vmatpush1.bf16.msra.mxu0 %v261
    %271 = vmatprep.subr.bf16.mxu0 0
    %272 = vmatpush1.bf16.msra.mxu0 %v262
    %273 = vmatprep.subr.bf16.mxu0 0
    %274 = vmatpush1.bf16.msra.mxu0 0
    %275 = vmatprep.subr.bf16.mxu0 0
    %276 = vmatpush1.bf16.msra.mxu0 0
    %277 = vmatprep.subr.bf16.mxu0 0
    %278 = vmatpush1.bf16.msra.mxu0 0
    %279 = vmatprep.subr.bf16.mxu0 0
    %280 = vmatpush1.bf16.msra.mxu0 0
    %281 = vmatprep.subr.bf16.mxu0 0
    %282 = vmatpush1.bf16.msra.mxu0 0
    %283 = vmatprep.subr.bf16.mxu0 0
    %284 = vmatpush1.bf16.msra.mxu0 0
    %285 = vmatprep.subr.bf16.mxu0 0
    %286 = vmatpush1.bf16.msra.mxu0 0
    %287 = vmatprep.subr.bf16.mxu0 0
    %288 = vmatpush1.bf16.msra.mxu0 0
    %289 = vmatprep.subr.bf16.mxu0 0
    %290 = vmatpush1.bf16.msra.mxu0 0
    %291 = vmatprep.subr.bf16.mxu0 0
    %292 = vmatpush1.bf16.msra.mxu0 0
    %293 = vmatprep.subr.bf16.mxu0 0
    %294 = vmatpush1.bf16.msra.mxu0 0
    %295 = vmatprep.subr.bf16.mxu0 0
    %296 = vmatpush1.bf16.msra.mxu0 0
    %297 = vmatprep.subr.bf16.mxu0 0
    %298 = vmatpush1.bf16.msra.mxu0 0
    %299 = vmatprep.subr.bf16.mxu0 0
    %300 = vmatpush1.bf16.msra.mxu0 0
    %301 = vmatprep.mubr.bf16.mxu0 0
    %302 = vmatmul.mubr.bf16.gmra.mrb[0].mxu0 %v267
    %v303 = vpop.f32.mrb[0].mxu0
    %v304 = vadd.f32 %v241, %v303
    %v305 = vpop.f32.mrb[0].mxu0
    %v306 = vpop.f32.mrb[0].mxu0
    %v307 = vpop.f32.mrb[0].mxu0
    %308 = vdwg.mxu0
    %v309 = vld [vmem:[#allocation2] sm:$0xff]
    %v310 = vpack.c.bf16 %v248, %v248
    %v315 = vunpack.c.l.b16 %v224
    %v316 = vunpack.c.l.b16 %v225
    %v317 = vunpack.c.l.b16 %v226
    %v318 = vunpack.c.l.b16 %v227
    %v319 = vpack.c.b16 %v316, %v315
    %v320 = vpack.c.b16 %v318, %v317
    %v324 = vsel %vm265, %v310, 0
    %326 = vmatprep.subr.bf16.mxu0 0
    %327 = vmatpush1.bf16.msra.mxu0 %v319
    %328 = vmatprep.subr.bf16.mxu0 0
    %329 = vmatpush1.bf16.msra.mxu0 %v320
    %330 = vmatprep.subr.bf16.mxu0 0
    %331 = vmatpush1.bf16.msra.mxu0 0
    %332 = vmatprep.subr.bf16.mxu0 0
    %333 = vmatpush1.bf16.msra.mxu0 0
    %334 = vmatprep.subr.bf16.mxu0 0
    %335 = vmatpush1.bf16.msra.mxu0 0
    %336 = vmatprep.subr.bf16.mxu0 0
    %337 = vmatpush1.bf16.msra.mxu0 0
    %338 = vmatprep.subr.bf16.mxu0 0
    %339 = vmatpush1.bf16.msra.mxu0 0
    %340 = vmatprep.subr.bf16.mxu0 0
    %341 = vmatpush1.bf16.msra.mxu0 0
    %342 = vmatprep.subr.bf16.mxu0 0
    %343 = vmatpush1.bf16.msra.mxu0 0
    %344 = vmatprep.subr.bf16.mxu0 0
    %345 = vmatpush1.bf16.msra.mxu0 0
    %346 = vmatprep.subr.bf16.mxu0 0
    %347 = vmatpush1.bf16.msra.mxu0 0
    %348 = vmatprep.subr.bf16.mxu0 0
    %349 = vmatpush1.bf16.msra.mxu0 0
    %350 = vmatprep.subr.bf16.mxu0 0
    %351 = vmatpush1.bf16.msra.mxu0 0
    %352 = vmatprep.subr.bf16.mxu0 0
    %353 = vmatpush1.bf16.msra.mxu0 0
    %354 = vmatprep.subr.bf16.mxu0 0
    %355 = vmatpush1.bf16.msra.mxu0 0
    %356 = vmatprep.subr.bf16.mxu0 0
    %357 = vmatpush1.bf16.msra.mxu0 0
    %358 = vmatprep.mubr.bf16.mxu0 0
    %359 = vmatmul.mubr.bf16.gmra.mrb[0].mxu0 %v324
    %v360 = vpop.f32.mrb[0].mxu0
    %v361 = vadd.f32 0.0, %v360
    %v362 = vpop.f32.mrb[0].mxu0
    %v363 = vpop.f32.mrb[0].mxu0
    %v364 = vpop.f32.mrb[0].mxu0
    %365 = vdwg.mxu0
    %v366 = vadd.f32 %v309, %v361
    %v367 = vtanh.pop %v366
    %v368 = vxor.u32 %v366, 2147483648
    %v369 = vmul.f32 %v368, 1.442695
    %v370 = vpow.pop %v369
    %v371 = vadd.f32 %v370, 1.0
    %v372 = vrcp.pop %v371
    %v373 = vmul.f32 1.0, %v372
    %v374 = vsel %vm247, %v367, %v373
    %376 = vrot.lane.b32.xlu0 %v249, 32
    %v377 = vpop.permute.xlu0 %376
    %v379 = vmul.f32 %v374, %v377
    %381 = vrot.lane.b32.xlu0 %v374, 64
    %v382 = vpop.permute.xlu0 %381
    %v384 = vmul.f32 %v374, %v382
    %386 = vrot.lane.b32.xlu0 %v384, 32
    %v387 = vpop.permute.xlu0 %386
    %v389 = vadd.f32 %v379, %v387
    %v390 = vtanh.pop %v389
    %392 = vrot.lane.b32.xlu0 %v390, 64
    %v393 = vpop.permute.xlu0 %392
    %v395 = vmul.f32 %v374, %v393
    %v396 = vpack.c.bf16 %v395, %v395
    %398 = vrot.lane.b32.xlu0 %v396, 32
    %v399 = vpop.permute.xlu0 %398
    %v404 = vunpack.c.l.b16 %v228
    %v405 = vunpack.c.l.b16 %v229
    %v406 = vunpack.c.l.b16 %v230
    %v407 = vunpack.c.l.b16 %v231
    %v408 = vpack.c.b16 %v405, %v404
    %v409 = vpack.c.b16 %v407, %v406
    %v413 = vsel %vm265, %v399, 0
    %415 = vmatprep.subr.bf16.mxu0 0
    %416 = vmatpush1.bf16.msra.mxu0 %v408
    %417 = vmatprep.subr.bf16.mxu0 0
    %418 = vmatpush1.bf16.msra.mxu0 %v409
    %419 = vmatprep.subr.bf16.mxu0 0
    %420 = vmatpush1.bf16.msra.mxu0 0
    %421 = vmatprep.subr.bf16.mxu0 0
    %422 = vmatpush1.bf16.msra.mxu0 0
    %423 = vmatprep.subr.bf16.mxu0 0
    %424 = vmatpush1.bf16.msra.mxu0 0
    %425 = vmatprep.subr.bf16.mxu0 0
    %426 = vmatpush1.bf16.msra.mxu0 0
    %427 = vmatprep.subr.bf16.mxu0 0
    %428 = vmatpush1.bf16.msra.mxu0 0
    %429 = vmatprep.subr.bf16.mxu0 0
    %430 = vmatpush1.bf16.msra.mxu0 0
    %431 = vmatprep.subr.bf16.mxu0 0
    %432 = vmatpush1.bf16.msra.mxu0 0
    %433 = vmatprep.subr.bf16.mxu0 0
    %434 = vmatpush1.bf16.msra.mxu0 0
    %435 = vmatprep.subr.bf16.mxu0 0
    %436 = vmatpush1.bf16.msra.mxu0 0
    %437 = vmatprep.subr.bf16.mxu0 0
    %438 = vmatpush1.bf16.msra.mxu0 0
    %439 = vmatprep.subr.bf16.mxu0 0
    %440 = vmatpush1.bf16.msra.mxu0 0
    %441 = vmatprep.subr.bf16.mxu0 0
    %442 = vmatpush1.bf16.msra.mxu0 0
    %443 = vmatprep.subr.bf16.mxu0 0
    %444 = vmatpush1.bf16.msra.mxu0 0
    %445 = vmatprep.subr.bf16.mxu0 0
    %446 = vmatpush1.bf16.msra.mxu0 0
    %447 = vmatprep.mubr.bf16.mxu0 0
    %448 = vmatmul.mubr.bf16.gmra.mrb[0].mxu0 %v413
    %v449 = vpop.f32.mrb[0].mxu0
    %v450 = vadd.f32 0.0, %v449
    %v451 = vpop.f32.mrb[0].mxu0
    %v452 = vpop.f32.mrb[0].mxu0
    %v453 = vpop.f32.mrb[0].mxu0
    %454 = vdwg.mxu0
    %v455 = vadd.f32 %v304, %v450
    %v456 = vtanh.pop %v455
    %v457 = vxor.u32 %v455, 2147483648
    %v458 = vmul.f32 %v457, 1.442695
    %v459 = vpow.pop %v458
    %v460 = vadd.f32 %v459, 1.0
    %v461 = vrcp.pop %v460
    %v462 = vmul.f32 1.0, %v461
    %v463 = vsel %vm247, %v456, %v462
    %465 = vrot.lane.b32.xlu0 %v251, 32
    %v466 = vpop.permute.xlu0 %465
    %v468 = vmul.f32 %v463, %v466
    %470 = vrot.lane.b32.xlu0 %v463, 64
    %v471 = vpop.permute.xlu0 %470
    %v473 = vmul.f32 %v463, %v471
    %475 = vrot.lane.b32.xlu0 %v473, 32
    %v476 = vpop.permute.xlu0 %475
    %v478 = vadd.f32 %v468, %v476
    %v479 = vtanh.pop %v478
    %481 = vrot.lane.b32.xlu0 %v479, 64
    %v482 = vpop.permute.xlu0 %481
    %v484 = vmul.f32 %v463, %v482
    %v485 = vpack.c.bf16 %v484, %v484
    %487 = vrot.lane.b32.xlu0 %v485, 32
    %v488 = vpop.permute.xlu0 %487
    %v490 = vsel %vm265, %v488, 0
    %492 = vmatprep.subr.bf16.mxu0 0
    %493 = vmatpush1.bf16.msra.mxu0 %v261
    %494 = vmatprep.subr.bf16.mxu0 0
    %495 = vmatpush1.bf16.msra.mxu0 %v262
    %496 = vmatprep.subr.bf16.mxu0 0
    %497 = vmatpush1.bf16.msra.mxu0 0
    %498 = vmatprep.subr.bf16.mxu0 0
    %499 = vmatpush1.bf16.msra.mxu0 0
    %500 = vmatprep.subr.bf16.mxu0 0
    %501 = vmatpush1.bf16.msra.mxu0 0
    %502 = vmatprep.subr.bf16.mxu0 0
    %503 = vmatpush1.bf16.msra.mxu0 0
    %504 = vmatprep.subr.bf16.mxu0 0
    %505 = vmatpush1.bf16.msra.mxu0 0
    %506 = vmatprep.subr.bf16.mxu0 0
    %507 = vmatpush1.bf16.msra.mxu0 0
    %508 = vmatprep.subr.bf16.mxu0 0
    %509 = vmatpush1.bf16.msra.mxu0 0
    %510 = vmatprep.subr.bf16.mxu0 0
    %511 = vmatpush1.bf16.msra.mxu0 0
    %512 = vmatprep.subr.bf16.mxu0 0
    %513 = vmatpush1.bf16.msra.mxu0 0
    %514 = vmatprep.subr.bf16.mxu0 0
    %515 = vmatpush1.bf16.msra.mxu0 0
    %516 = vmatprep.subr.bf16.mxu0 0
    %517 = vmatpush1.bf16.msra.mxu0 0
    %518 = vmatprep.subr.bf16.mxu0 0
    %519 = vmatpush1.bf16.msra.mxu0 0
    %520 = vmatprep.subr.bf16.mxu0 0
    %521 = vmatpush1.bf16.msra.mxu0 0
    %522 = vmatprep.subr.bf16.mxu0 0
    %523 = vmatpush1.bf16.msra.mxu0 0
    %524 = vmatprep.mubr.bf16.mxu0 0
    %525 = vmatmul.mubr.bf16.gmra.mrb[0].mxu0 %v490
    %v526 = vpop.f32.mrb[0].mxu0
    %v527 = vadd.f32 %v241, %v526
    %v528 = vpop.f32.mrb[0].mxu0
    %v529 = vpop.f32.mrb[0].mxu0
    %v530 = vpop.f32.mrb[0].mxu0
    %531 = vdwg.mxu0
    %s532 = scalar_lea.vmem [#allocation2], 8
    %v533 = vld [vmem:[%s532] sm:$0xff]
    %534 = vmatprep.subr.bf16.mxu0 0
    %535 = vmatpush1.bf16.msra.mxu0 %v319
    %536 = vmatprep.subr.bf16.mxu0 0
    %537 = vmatpush1.bf16.msra.mxu0 %v320
    %538 = vmatprep.subr.bf16.mxu0 0
    %539 = vmatpush1.bf16.msra.mxu0 0
    %540 = vmatprep.subr.bf16.mxu0 0
    %541 = vmatpush1.bf16.msra.mxu0 0
    %542 = vmatprep.subr.bf16.mxu0 0
    %543 = vmatpush1.bf16.msra.mxu0 0
    %544 = vmatprep.subr.bf16.mxu0 0
    %545 = vmatpush1.bf16.msra.mxu0 0
    %546 = vmatprep.subr.bf16.mxu0 0
    %547 = vmatpush1.bf16.msra.mxu0 0
    %548 = vmatprep.subr.bf16.mxu0 0
    %549 = vmatpush1.bf16.msra.mxu0 0
    %550 = vmatprep.subr.bf16.mxu0 0
    %551 = vmatpush1.bf16.msra.mxu0 0
    %552 = vmatprep.subr.bf16.mxu0 0
    %553 = vmatpush1.bf16.msra.mxu0 0
    %554 = vmatprep.subr.bf16.mxu0 0
    %555 = vmatpush1.bf16.msra.mxu0 0
    %556 = vmatprep.subr.bf16.mxu0 0
    %557 = vmatpush1.bf16.msra.mxu0 0
    %558 = vmatprep.subr.bf16.mxu0 0
    %559 = vmatpush1.bf16.msra.mxu0 0
    %560 = vmatprep.subr.bf16.mxu0 0
    %561 = vmatpush1.bf16.msra.mxu0 0
    %562 = vmatprep.subr.bf16.mxu0 0
    %563 = vmatpush1.bf16.msra.mxu0 0
    %564 = vmatprep.subr.bf16.mxu0 0
    %565 = vmatpush1.bf16.msra.mxu0 0
    %566 = vmatprep.mubr.bf16.mxu0 0
    %567 = vmatmul.mubr.bf16.gmra.mrb[0].mxu0 %v413
    %v568 = vpop.f32.mrb[0].mxu0
    %v569 = vadd.f32 0.0, %v568
    %v570 = vpop.f32.mrb[0].mxu0
    %v571 = vpop.f32.mrb[0].mxu0
    %v572 = vpop.f32.mrb[0].mxu0
    %573 = vdwg.mxu0
    %v574 = vadd.f32 %v533, %v569
    %v575 = vtanh.pop %v574
    %v576 = vxor.u32 %v574, 2147483648
    %v577 = vmul.f32 %v576, 1.442695
    %v578 = vpow.pop %v577
    %v579 = vadd.f32 %v578, 1.0
    %v580 = vrcp.pop %v579
    %v581 = vmul.f32 1.0, %v580
    %v582 = vsel %vm247, %v575, %v581
    %v583 = vmul.f32 %v582, %v389
    %585 = vrot.lane.b32.xlu0 %v582, 64
    %v586 = vpop.permute.xlu0 %585
    %v588 = vmul.f32 %v582, %v586
    %590 = vrot.lane.b32.xlu0 %v588, 32
    %v591 = vpop.permute.xlu0 %590
    %v593 = vadd.f32 %v583, %v591
    %v594 = vtanh.pop %v593
    %596 = vrot.lane.b32.xlu0 %v594, 64
    %v597 = vpop.permute.xlu0 %596
    %v599 = vmul.f32 %v582, %v597
    %v600 = vpack.c.bf16 %v599, %v599
    %602 = vrot.lane.b32.xlu0 %v600, 32
    %v603 = vpop.permute.xlu0 %602
    %v605 = vsel %vm265, %v603, 0
    %607 = vmatprep.subr.bf16.mxu0 0
    %608 = vmatpush1.bf16.msra.mxu0 %v408
    %609 = vmatprep.subr.bf16.mxu0 0
    %610 = vmatpush1.bf16.msra.mxu0 %v409
    %611 = vmatprep.subr.bf16.mxu0 0
    %612 = vmatpush1.bf16.msra.mxu0 0
    %613 = vmatprep.subr.bf16.mxu0 0
    %614 = vmatpush1.bf16.msra.mxu0 0
    %615 = vmatprep.subr.bf16.mxu0 0
    %616 = vmatpush1.bf16.msra.mxu0 0
    %617 = vmatprep.subr.bf16.mxu0 0
    %618 = vmatpush1.bf16.msra.mxu0 0
    %619 = vmatprep.subr.bf16.mxu0 0
    %620 = vmatpush1.bf16.msra.mxu0 0
    %621 = vmatprep.subr.bf16.mxu0 0
    %622 = vmatpush1.bf16.msra.mxu0 0
    %623 = vmatprep.subr.bf16.mxu0 0
    %624 = vmatpush1.bf16.msra.mxu0 0
    %625 = vmatprep.subr.bf16.mxu0 0
    %626 = vmatpush1.bf16.msra.mxu0 0
    %627 = vmatprep.subr.bf16.mxu0 0
    %628 = vmatpush1.bf16.msra.mxu0 0
    %629 = vmatprep.subr.bf16.mxu0 0
    %630 = vmatpush1.bf16.msra.mxu0 0
    %631 = vmatprep.subr.bf16.mxu0 0
    %632 = vmatpush1.bf16.msra.mxu0 0
    %633 = vmatprep.subr.bf16.mxu0 0
    %634 = vmatpush1.bf16.msra.mxu0 0
    %635 = vmatprep.subr.bf16.mxu0 0
    %636 = vmatpush1.bf16.msra.mxu0 0
    %637 = vmatprep.subr.bf16.mxu0 0
    %638 = vmatpush1.bf16.msra.mxu0 0
    %639 = vmatprep.mubr.bf16.mxu0 0
    %640 = vmatmul.mubr.bf16.gmra.mrb[0].mxu0 %v605
    %v641 = vpop.f32.mrb[0].mxu0
    %v642 = vadd.f32 0.0, %v641
    %v643 = vpop.f32.mrb[0].mxu0
    %v644 = vpop.f32.mrb[0].mxu0
    %v645 = vpop.f32.mrb[0].mxu0
    %646 = vdwg.mxu0
    %v647 = vadd.f32 %v527, %v642
    %v648 = vtanh.pop %v647
    %v649 = vxor.u32 %v647, 2147483648
    %v650 = vmul.f32 %v649, 1.442695
    %v651 = vpow.pop %v650
    %v652 = vadd.f32 %v651, 1.0
    %v653 = vrcp.pop %v652
    %v654 = vmul.f32 1.0, %v653
    %v655 = vsel %vm247, %v648, %v654
    %v656 = vmul.f32 %v655, %v478
    %658 = vrot.lane.b32.xlu0 %v655, 64
    %v659 = vpop.permute.xlu0 %658
    %v661 = vmul.f32 %v655, %v659
    %663 = vrot.lane.b32.xlu0 %v661, 32
    %v664 = vpop.permute.xlu0 %663
    %v666 = vadd.f32 %v656, %v664
    %v667 = vtanh.pop %v666
    %669 = vrot.lane.b32.xlu0 %v667, 64
    %v670 = vpop.permute.xlu0 %669
    %v672 = vmul.f32 %v655, %v670
    %v673 = vpack.c.bf16 %v672, %v672
    %675 = vrot.lane.b32.xlu0 %v673, 32
    %v676 = vpop.permute.xlu0 %675
    %v678 = vsel %vm265, %v676, 0
    %680 = vmatprep.subr.bf16.mxu0 0
    %681 = vmatpush1.bf16.msra.mxu0 %v261
    %682 = vmatprep.subr.bf16.mxu0 0
    %683 = vmatpush1.bf16.msra.mxu0 %v262
    %684 = vmatprep.subr.bf16.mxu0 0
    %685 = vmatpush1.bf16.msra.mxu0 0
    %686 = vmatprep.subr.bf16.mxu0 0
    %687 = vmatpush1.bf16.msra.mxu0 0
    %688 = vmatprep.subr.bf16.mxu0 0
    %689 = vmatpush1.bf16.msra.mxu0 0
    %690 = vmatprep.subr.bf16.mxu0 0
    %691 = vmatpush1.bf16.msra.mxu0 0
    %692 = vmatprep.subr.bf16.mxu0 0
    %693 = vmatpush1.bf16.msra.mxu0 0
    %694 = vmatprep.subr.bf16.mxu0 0
    %695 = vmatpush1.bf16.msra.mxu0 0
    %696 = vmatprep.subr.bf16.mxu0 0
    %697 = vmatpush1.bf16.msra.mxu0 0
    %698 = vmatprep.subr.bf16.mxu0 0
    %699 = vmatpush1.bf16.msra.mxu0 0
    %700 = vmatprep.subr.bf16.mxu0 0
    %701 = vmatpush1.bf16.msra.mxu0 0
    %702 = vmatprep.subr.bf16.mxu0 0
    %703 = vmatpush1.bf16.msra.mxu0 0
    %704 = vmatprep.subr.bf16.mxu0 0
    %705 = vmatpush1.bf16.msra.mxu0 0
    %706 = vmatprep.subr.bf16.mxu0 0
    %707 = vmatpush1.bf16.msra.mxu0 0
    %708 = vmatprep.subr.bf16.mxu0 0
    %709 = vmatpush1.bf16.msra.mxu0 0
    %710 = vmatprep.subr.bf16.mxu0 0
    %711 = vmatpush1.bf16.msra.mxu0 0
    %712 = vmatprep.mubr.bf16.mxu0 0
    %713 = vmatmul.mubr.bf16.gmra.mrb[0].mxu0 %v678
    %v714 = vpop.f32.mrb[0].mxu0
    %v715 = vadd.f32 %v241, %v714
    %v716 = vpop.f32.mrb[0].mxu0
    %v717 = vpop.f32.mrb[0].mxu0
    %v718 = vpop.f32.mrb[0].mxu0
    %719 = vdwg.mxu0
    %s720 = scalar_lea.vmem [#allocation2], 16
    %v721 = vld [vmem:[%s720] sm:$0xff]
    %722 = vmatprep.subr.bf16.mxu0 0
    %723 = vmatpush1.bf16.msra.mxu0 %v319
    %724 = vmatprep.subr.bf16.mxu0 0
    %725 = vmatpush1.bf16.msra.mxu0 %v320
    %726 = vmatprep.subr.bf16.mxu0 0
    %727 = vmatpush1.bf16.msra.mxu0 0
    %728 = vmatprep.subr.bf16.mxu0 0
    %729 = vmatpush1.bf16.msra.mxu0 0
    %730 = vmatprep.subr.bf16.mxu0 0
    %731 = vmatpush1.bf16.msra.mxu0 0
    %732 = vmatprep.subr.bf16.mxu0 0
    %733 = vmatpush1.bf16.msra.mxu0 0
    %734 = vmatprep.subr.bf16.mxu0 0
    %735 = vmatpush1.bf16.msra.mxu0 0
    %736 = vmatprep.subr.bf16.mxu0 0
    %737 = vmatpush1.bf16.msra.mxu0 0
    %738 = vmatprep.subr.bf16.mxu0 0
    %739 = vmatpush1.bf16.msra.mxu0 0
    %740 = vmatprep.subr.bf16.mxu0 0
    %741 = vmatpush1.bf16.msra.mxu0 0
    %742 = vmatprep.subr.bf16.mxu0 0
    %743 = vmatpush1.bf16.msra.mxu0 0
    %744 = vmatprep.subr.bf16.mxu0 0
    %745 = vmatpush1.bf16.msra.mxu0 0
    %746 = vmatprep.subr.bf16.mxu0 0
    %747 = vmatpush1.bf16.msra.mxu0 0
    %748 = vmatprep.subr.bf16.mxu0 0
    %749 = vmatpush1.bf16.msra.mxu0 0
    %750 = vmatprep.subr.bf16.mxu0 0
    %751 = vmatpush1.bf16.msra.mxu0 0
    %752 = vmatprep.subr.bf16.mxu0 0
    %753 = vmatpush1.bf16.msra.mxu0 0
    %754 = vmatprep.mubr.bf16.mxu0 0
    %755 = vmatmul.mubr.bf16.gmra.mrb[0].mxu0 %v605
    %v756 = vpop.f32.mrb[0].mxu0
    %v757 = vadd.f32 0.0, %v756
    %v758 = vpop.f32.mrb[0].mxu0
    %v759 = vpop.f32.mrb[0].mxu0
    %v760 = vpop.f32.mrb[0].mxu0
    %761 = vdwg.mxu0
    %v762 = vadd.f32 %v721, %v757
    %v763 = vtanh.pop %v762
    %v764 = vxor.u32 %v762, 2147483648
    %v765 = vmul.f32 %v764, 1.442695
    %v766 = vpow.pop %v765
    %v767 = vadd.f32 %v766, 1.0
    %v768 = vrcp.pop %v767
    %v769 = vmul.f32 1.0, %v768
    %v770 = vsel %vm247, %v763, %v769
    %v771 = vmul.f32 %v770, %v593
    %773 = vrot.lane.b32.xlu0 %v770, 64
    %v774 = vpop.permute.xlu0 %773
    %v776 = vmul.f32 %v770, %v774
    %778 = vrot.lane.b32.xlu0 %v776, 32
    %v779 = vpop.permute.xlu0 %778
    %v781 = vadd.f32 %v771, %v779
    %v782 = vtanh.pop %v781
    %784 = vrot.lane.b32.xlu0 %v782, 64
    %v785 = vpop.permute.xlu0 %784
    %v787 = vmul.f32 %v770, %v785
    %v788 = vpack.c.bf16 %v787, %v787
    %790 = vrot.lane.b32.xlu0 %v788, 32
    %v791 = vpop.permute.xlu0 %790
    %v793 = vsel %vm265, %v791, 0
    %795 = vmatprep.subr.bf16.mxu0 0
    %796 = vmatpush1.bf16.msra.mxu0 %v408
    %797 = vmatprep.subr.bf16.mxu0 0
    %798 = vmatpush1.bf16.msra.mxu0 %v409
    %799 = vmatprep.subr.bf16.mxu0 0
    %800 = vmatpush1.bf16.msra.mxu0 0
    %801 = vmatprep.subr.bf16.mxu0 0
    %802 = vmatpush1.bf16.msra.mxu0 0
    %803 = vmatprep.subr.bf16.mxu0 0
    %804 = vmatpush1.bf16.msra.mxu0 0
    %805 = vmatprep.subr.bf16.mxu0 0
    %806 = vmatpush1.bf16.msra.mxu0 0
    %807 = vmatprep.subr.bf16.mxu0 0
    %808 = vmatpush1.bf16.msra.mxu0 0
    %809 = vmatprep.subr.bf16.mxu0 0
    %810 = vmatpush1.bf16.msra.mxu0 0
    %811 = vmatprep.subr.bf16.mxu0 0
    %812 = vmatpush1.bf16.msra.mxu0 0
    %813 = vmatprep.subr.bf16.mxu0 0
    %814 = vmatpush1.bf16.msra.mxu0 0
    %815 = vmatprep.subr.bf16.mxu0 0
    %816 = vmatpush1.bf16.msra.mxu0 0
    %817 = vmatprep.subr.bf16.mxu0 0
    %818 = vmatpush1.bf16.msra.mxu0 0
    %819 = vmatprep.subr.bf16.mxu0 0
    %820 = vmatpush1.bf16.msra.mxu0 0
    %821 = vmatprep.subr.bf16.mxu0 0
    %822 = vmatpush1.bf16.msra.mxu0 0
    %823 = vmatprep.subr.bf16.mxu0 0
    %824 = vmatpush1.bf16.msra.mxu0 0
    %825 = vmatprep.subr.bf16.mxu0 0
    %826 = vmatpush1.bf16.msra.mxu0 0
    %827 = vmatprep.mubr.bf16.mxu0 0
    %828 = vmatmul.mubr.bf16.gmra.mrb[0].mxu0 %v793
    %v829 = vpop.f32.mrb[0].mxu0
    %v830 = vadd.f32 0.0, %v829
    %v831 = vpop.f32.mrb[0].mxu0
    %v832 = vpop.f32.mrb[0].mxu0
    %v833 = vpop.f32.mrb[0].mxu0
    %834 = vdwg.mxu0
    %v835 = vadd.f32 %v715, %v830
    %v836 = vtanh.pop %v835
    %v837 = vxor.u32 %v835, 2147483648
    %v838 = vmul.f32 %v837, 1.442695
    %v839 = vpow.pop %v838
    %v840 = vadd.f32 %v839, 1.0
    %v841 = vrcp.pop %v840
    %v842 = vmul.f32 1.0, %v841
    %v843 = vsel %vm247, %v836, %v842
    %v844 = vmul.f32 %v843, %v666
    %846 = vrot.lane.b32.xlu0 %v843, 64
    %v847 = vpop.permute.xlu0 %846
    %v849 = vmul.f32 %v843, %v847
    %851 = vrot.lane.b32.xlu0 %v849, 32
    %v852 = vpop.permute.xlu0 %851
    %v854 = vadd.f32 %v844, %v852
    %v855 = vtanh.pop %v854
    %857 = vrot.lane.b32.xlu0 %v855, 64
    %v858 = vpop.permute.xlu0 %857
    %v860 = vmul.f32 %v843, %v858
    %v861 = vpack.c.bf16 %v860, %v860
    %863 = vrot.lane.b32.xlu0 %v861, 32
    %v864 = vpop.permute.xlu0 %863
    %v866 = vsel %vm265, %v864, 0
    %868 = vmatprep.subr.bf16.mxu0 0
    %869 = vmatpush1.bf16.msra.mxu0 %v261
    %870 = vmatprep.subr.bf16.mxu0 0
    %871 = vmatpush1.bf16.msra.mxu0 %v262
    %872 = vmatprep.subr.bf16.mxu0 0
    %873 = vmatpush1.bf16.msra.mxu0 0
    %874 = vmatprep.subr.bf16.mxu0 0
    %875 = vmatpush1.bf16.msra.mxu0 0
    %876 = vmatprep.subr.bf16.mxu0 0
    %877 = vmatpush1.bf16.msra.mxu0 0
    %878 = vmatprep.subr.bf16.mxu0 0
    %879 = vmatpush1.bf16.msra.mxu0 0
    %880 = vmatprep.subr.bf16.mxu0 0
    %881 = vmatpush1.bf16.msra.mxu0 0
    %882 = vmatprep.subr.bf16.mxu0 0
    %883 = vmatpush1.bf16.msra.mxu0 0
    %884 = vmatprep.subr.bf16.mxu0 0
    %885 = vmatpush1.bf16.msra.mxu0 0
    %886 = vmatprep.subr.bf16.mxu0 0
    %887 = vmatpush1.bf16.msra.mxu0 0
    %888 = vmatprep.subr.bf16.mxu0 0
    %889 = vmatpush1.bf16.msra.mxu0 0
    %890 = vmatprep.subr.bf16.mxu0 0
    %891 = vmatpush1.bf16.msra.mxu0 0
    %892 = vmatprep.subr.bf16.mxu0 0
    %893 = vmatpush1.bf16.msra.mxu0 0
    %894 = vmatprep.subr.bf16.mxu0 0
    %895 = vmatpush1.bf16.msra.mxu0 0
    %896 = vmatprep.subr.bf16.mxu0 0
    %897 = vmatpush1.bf16.msra.mxu0 0
    %898 = vmatprep.subr.bf16.mxu0 0
    %899 = vmatpush1.bf16.msra.mxu0 0
    %900 = vmatprep.mubr.bf16.mxu0 0
    %901 = vmatmul.mubr.bf16.gmra.mrb[0].mxu0 %v866
    %v902 = vpop.f32.mrb[0].mxu0
    %v903 = vadd.f32 %v241, %v902
    %v904 = vpop.f32.mrb[0].mxu0
    %v905 = vpop.f32.mrb[0].mxu0
    %v906 = vpop.f32.mrb[0].mxu0
    %907 = vdwg.mxu0
    %s908 = scalar_lea.vmem [#allocation2], 24
    %v909 = vld [vmem:[%s908] sm:$0xff]
    %910 = vmatprep.subr.bf16.mxu0 0
    %911 = vmatpush1.bf16.msra.mxu0 %v319
    %912 = vmatprep.subr.bf16.mxu0 0
    %913 = vmatpush1.bf16.msra.mxu0 %v320
    %914 = vmatprep.subr.bf16.mxu0 0
    %915 = vmatpush1.bf16.msra.mxu0 0
    %916 = vmatprep.subr.bf16.mxu0 0
    %917 = vmatpush1.bf16.msra.mxu0 0
    %918 = vmatprep.subr.bf16.mxu0 0
    %919 = vmatpush1.bf16.msra.mxu0 0
    %920 = vmatprep.subr.bf16.mxu0 0
    %921 = vmatpush1.bf16.msra.mxu0 0
    %922 = vmatprep.subr.bf16.mxu0 0
    %923 = vmatpush1.bf16.msra.mxu0 0
    %924 = vmatprep.subr.bf16.mxu0 0
    %925 = vmatpush1.bf16.msra.mxu0 0
    %926 = vmatprep.subr.bf16.mxu0 0
    %927 = vmatpush1.bf16.msra.mxu0 0
    %928 = vmatprep.subr.bf16.mxu0 0
    %929 = vmatpush1.bf16.msra.mxu0 0
    %930 = vmatprep.subr.bf16.mxu0 0
    %931 = vmatpush1.bf16.msra.mxu0 0
    %932 = vmatprep.subr.bf16.mxu0 0
    %933 = vmatpush1.bf16.msra.mxu0 0
    %934 = vmatprep.subr.bf16.mxu0 0
    %935 = vmatpush1.bf16.msra.mxu0 0
    %936 = vmatprep.subr.bf16.mxu0 0
    %937 = vmatpush1.bf16.msra.mxu0 0
    %938 = vmatprep.subr.bf16.mxu0 0
    %939 = vmatpush1.bf16.msra.mxu0 0
    %940 = vmatprep.subr.bf16.mxu0 0
    %941 = vmatpush1.bf16.msra.mxu0 0
    %942 = vmatprep.mubr.bf16.mxu0 0
    %943 = vmatmul.mubr.bf16.gmra.mrb[0].mxu0 %v793
    %v944 = vpop.f32.mrb[0].mxu0
    %v945 = vadd.f32 0.0, %v944
    %v946 = vpop.f32.mrb[0].mxu0
    %v947 = vpop.f32.mrb[0].mxu0
    %v948 = vpop.f32.mrb[0].mxu0
    %949 = vdwg.mxu0
    %v950 = vadd.f32 %v909, %v945
    %v951 = vtanh.pop %v950
    %v952 = vxor.u32 %v950, 2147483648
    %v953 = vmul.f32 %v952, 1.442695
    %v954 = vpow.pop %v953
    %v955 = vadd.f32 %v954, 1.0
    %v956 = vrcp.pop %v955
    %v957 = vmul.f32 1.0, %v956
    %v958 = vsel %vm247, %v951, %v957
    %v959 = vmul.f32 %v958, %v781
    %961 = vrot.lane.b32.xlu0 %v958, 64
    %v962 = vpop.permute.xlu0 %961
    %v964 = vmul.f32 %v958, %v962
    %966 = vrot.lane.b32.xlu0 %v964, 32
    %v967 = vpop.permute.xlu0 %966
    %v969 = vadd.f32 %v959, %v967
    %v970 = vtanh.pop %v969
    %972 = vrot.lane.b32.xlu0 %v970, 64
    %v973 = vpop.permute.xlu0 %972
    %v975 = vmul.f32 %v958, %v973
    %v976 = vpack.c.bf16 %v975, %v975
    %978 = vrot.lane.b32.xlu0 %v976, 32
    %v979 = vpop.permute.xlu0 %978
    %v981 = vsel %vm265, %v979, 0
    %983 = vmatprep.subr.bf16.mxu0 0
    %984 = vmatpush1.bf16.msra.mxu0 %v408
    %985 = vmatprep.subr.bf16.mxu0 0
    %986 = vmatpush1.bf16.msra.mxu0 %v409
    %987 = vmatprep.subr.bf16.mxu0 0
    %988 = vmatpush1.bf16.msra.mxu0 0
    %989 = vmatprep.subr.bf16.mxu0 0
    %990 = vmatpush1.bf16.msra.mxu0 0
    %991 = vmatprep.subr.bf16.mxu0 0
    %992 = vmatpush1.bf16.msra.mxu0 0
    %993 = vmatprep.subr.bf16.mxu0 0
    %994 = vmatpush1.bf16.msra.mxu0 0
    %995 = vmatprep.subr.bf16.mxu0 0
    %996 = vmatpush1.bf16.msra.mxu0 0
    %997 = vmatprep.subr.bf16.mxu0 0
    %998 = vmatpush1.bf16.msra.mxu0 0
    %999 = vmatprep.subr.bf16.mxu0 0
    %1000 = vmatpush1.bf16.msra.mxu0 0
    %1001 = vmatprep.subr.bf16.mxu0 0
    %1002 = vmatpush1.bf16.msra.mxu0 0
    %1003 = vmatprep.subr.bf16.mxu0 0
    %1004 = vmatpush1.bf16.msra.mxu0 0
    %1005 = vmatprep.subr.bf16.mxu0 0
    %1006 = vmatpush1.bf16.msra.mxu0 0
    %1007 = vmatprep.subr.bf16.mxu0 0
    %1008 = vmatpush1.bf16.msra.mxu0 0
    %1009 = vmatprep.subr.bf16.mxu0 0
    %1010 = vmatpush1.bf16.msra.mxu0 0
    %1011 = vmatprep.subr.bf16.mxu0 0
    %1012 = vmatpush1.bf16.msra.mxu0 0
    %1013 = vmatprep.subr.bf16.mxu0 0
    %1014 = vmatpush1.bf16.msra.mxu0 0
    %1015 = vmatprep.mubr.bf16.mxu0 0
    %1016 = vmatmul.mubr.bf16.gmra.mrb[0].mxu0 %v981
    %v1017 = vpop.f32.mrb[0].mxu0
    %v1018 = vadd.f32 0.0, %v1017
    %v1019 = vpop.f32.mrb[0].mxu0
    %v1020 = vpop.f32.mrb[0].mxu0
    %v1021 = vpop.f32.mrb[0].mxu0
    %1022 = vdwg.mxu0
    %v1023 = vadd.f32 %v903, %v1018
    %v1024 = vtanh.pop %v1023
    %v1025 = vxor.u32 %v1023, 2147483648
    %v1026 = vmul.f32 %v1025, 1.442695
    %v1027 = vpow.pop %v1026
    %v1028 = vadd.f32 %v1027, 1.0
    %v1029 = vrcp.pop %v1028
    %v1030 = vmul.f32 1.0, %v1029
    %v1031 = vsel %vm247, %v1024, %v1030
    %v1032 = vmul.f32 %v1031, %v854
    %1034 = vrot.lane.b32.xlu0 %v1031, 64
    %v1035 = vpop.permute.xlu0 %1034
    %v1037 = vmul.f32 %v1031, %v1035
    %1039 = vrot.lane.b32.xlu0 %v1037, 32
    %v1040 = vpop.permute.xlu0 %1039
    %v1042 = vadd.f32 %v1032, %v1040
    %v1043 = vtanh.pop %v1042
    %1045 = vrot.lane.b32.xlu0 %v1043, 64
    %v1046 = vpop.permute.xlu0 %1045
    %v1048 = vmul.f32 %v1031, %v1046
    %v1049 = vpack.c.bf16 %v1048, %v1048
    %1051 = vrot.lane.b32.xlu0 %v1049, 32
    %v1052 = vpop.permute.xlu0 %1051
    %v1054 = vsel %vm265, %v1052, 0
    %1056 = vmatprep.subr.bf16.mxu0 0
    %1057 = vmatpush1.bf16.msra.mxu0 %v261
    %1058 = vmatprep.subr.bf16.mxu0 0
    %1059 = vmatpush1.bf16.msra.mxu0 %v262
    %1060 = vmatprep.subr.bf16.mxu0 0
    %1061 = vmatpush1.bf16.msra.mxu0 0
    %1062 = vmatprep.subr.bf16.mxu0 0
    %1063 = vmatpush1.bf16.msra.mxu0 0
    %1064 = vmatprep.subr.bf16.mxu0 0
    %1065 = vmatpush1.bf16.msra.mxu0 0
    %1066 = vmatprep.subr.bf16.mxu0 0
    %1067 = vmatpush1.bf16.msra.mxu0 0
    %1068 = vmatprep.subr.bf16.mxu0 0
    %1069 = vmatpush1.bf16.msra.mxu0 0
    %1070 = vmatprep.subr.bf16.mxu0 0
    %1071 = vmatpush1.bf16.msra.mxu0 0
    %1072 = vmatprep.subr.bf16.mxu0 0
    %1073 = vmatpush1.bf16.msra.mxu0 0
    %1074 = vmatprep.subr.bf16.mxu0 0
    %1075 = vmatpush1.bf16.msra.mxu0 0
    %1076 = vmatprep.subr.bf16.mxu0 0
    %1077 = vmatpush1.bf16.msra.mxu0 0
    %1078 = vmatprep.subr.bf16.mxu0 0
    %1079 = vmatpush1.bf16.msra.mxu0 0
    %1080 = vmatprep.subr.bf16.mxu0 0
    %1081 = vmatpush1.bf16.msra.mxu0 0
    %1082 = vmatprep.subr.bf16.mxu0 0
    %1083 = vmatpush1.bf16.msra.mxu0 0
    %1084 = vmatprep.subr.bf16.mxu0 0
    %1085 = vmatpush1.bf16.msra.mxu0 0
    %1086 = vmatprep.subr.bf16.mxu0 0
    %1087 = vmatpush1.bf16.msra.mxu0 0
    %1088 = vmatprep.mubr.bf16.mxu0 0
    %1089 = vmatmul.mubr.bf16.gmra.mrb[0].mxu0 %v1054
    %v1090 = vpop.f32.mrb[0].mxu0
    %v1091 = vadd.f32 %v241, %v1090
    %v1092 = vpop.f32.mrb[0].mxu0
    %v1093 = vpop.f32.mrb[0].mxu0
    %v1094 = vpop.f32.mrb[0].mxu0
    %1095 = vdwg.mxu0
    %s1096 = scalar_lea.vmem [#allocation2], 32
    %v1097 = vld [vmem:[%s1096] sm:$0xff]
    %1098 = vmatprep.subr.bf16.mxu0 0
    %1099 = vmatpush1.bf16.msra.mxu0 %v319
    %1100 = vmatprep.subr.bf16.mxu0 0
    %1101 = vmatpush1.bf16.msra.mxu0 %v320
    %1102 = vmatprep.subr.bf16.mxu0 0
    %1103 = vmatpush1.bf16.msra.mxu0 0
    %1104 = vmatprep.subr.bf16.mxu0 0
    %1105 = vmatpush1.bf16.msra.mxu0 0
    %1106 = vmatprep.subr.bf16.mxu0 0
    %1107 = vmatpush1.bf16.msra.mxu0 0
    %1108 = vmatprep.subr.bf16.mxu0 0
    %1109 = vmatpush1.bf16.msra.mxu0 0
    %1110 = vmatprep.subr.bf16.mxu0 0
    %1111 = vmatpush1.bf16.msra.mxu0 0
    %1112 = vmatprep.subr.bf16.mxu0 0
    %1113 = vmatpush1.bf16.msra.mxu0 0
    %1114 = vmatprep.subr.bf16.mxu0 0
    %1115 = vmatpush1.bf16.msra.mxu0 0
    %1116 = vmatprep.subr.bf16.mxu0 0
    %1117 = vmatpush1.bf16.msra.mxu0 0
    %1118 = vmatprep.subr.bf16.mxu0 0
    %1119 = vmatpush1.bf16.msra.mxu0 0
    %1120 = vmatprep.subr.bf16.mxu0 0
    %1121 = vmatpush1.bf16.msra.mxu0 0
    %1122 = vmatprep.subr.bf16.mxu0 0
    %1123 = vmatpush1.bf16.msra.mxu0 0
    %1124 = vmatprep.subr.bf16.mxu0 0
    %1125 = vmatpush1.bf16.msra.mxu0 0
    %1126 = vmatprep.subr.bf16.mxu0 0
    %1127 = vmatpush1.bf16.msra.mxu0 0
    %1128 = vmatprep.subr.bf16.mxu0 0
    %1129 = vmatpush1.bf16.msra.mxu0 0
    %1130 = vmatprep.mubr.bf16.mxu0 0
    %1131 = vmatmul.mubr.bf16.gmra.mrb[0].mxu0 %v981
    %v1132 = vpop.f32.mrb[0].mxu0
    %v1133 = vadd.f32 0.0, %v1132
    %v1134 = vpop.f32.mrb[0].mxu0
    %v1135 = vpop.f32.mrb[0].mxu0
    %v1136 = vpop.f32.mrb[0].mxu0
    %1137 = vdwg.mxu0
    %v1138 = vadd.f32 %v1097, %v1133
    %v1139 = vtanh.pop %v1138
    %v1140 = vxor.u32 %v1138, 2147483648
    %v1141 = vmul.f32 %v1140, 1.442695
    %v1142 = vpow.pop %v1141
    %v1143 = vadd.f32 %v1142, 1.0
    %v1144 = vrcp.pop %v1143
    %v1145 = vmul.f32 1.0, %v1144
    %v1146 = vsel %vm247, %v1139, %v1145
    %v1147 = vmul.f32 %v1146, %v969
    %1149 = vrot.lane.b32.xlu0 %v1146, 64
    %v1150 = vpop.permute.xlu0 %1149
    %v1152 = vmul.f32 %v1146, %v1150
    %1154 = vrot.lane.b32.xlu0 %v1152, 32
    %v1155 = vpop.permute.xlu0 %1154
    %v1157 = vadd.f32 %v1147, %v1155
    %v1158 = vtanh.pop %v1157
    %1160 = vrot.lane.b32.xlu0 %v1158, 64
    %v1161 = vpop.permute.xlu0 %1160
    %v1163 = vmul.f32 %v1146, %v1161
    %v1164 = vpack.c.bf16 %v1163, %v1163
    %1166 = vrot.lane.b32.xlu0 %v1164, 32
    %v1167 = vpop.permute.xlu0 %1166
    %v1169 = vsel %vm265, %v1167, 0
    %1171 = vmatprep.subr.bf16.mxu0 0
    %1172 = vmatpush1.bf16.msra.mxu0 %v408
    %1173 = vmatprep.subr.bf16.mxu0 0
    %1174 = vmatpush1.bf16.msra.mxu0 %v409
    %1175 = vmatprep.subr.bf16.mxu0 0
    %1176 = vmatpush1.bf16.msra.mxu0 0
    %1177 = vmatprep.subr.bf16.mxu0 0
    %1178 = vmatpush1.bf16.msra.mxu0 0
    %1179 = vmatprep.subr.bf16.mxu0 0
    %1180 = vmatpush1.bf16.msra.mxu0 0
    %1181 = vmatprep.subr.bf16.mxu0 0
    %1182 = vmatpush1.bf16.msra.mxu0 0
    %1183 = vmatprep.subr.bf16.mxu0 0
    %1184 = vmatpush1.bf16.msra.mxu0 0
    %1185 = vmatprep.subr.bf16.mxu0 0
    %1186 = vmatpush1.bf16.msra.mxu0 0
    %1187 = vmatprep.subr.bf16.mxu0 0
    %1188 = vmatpush1.bf16.msra.mxu0 0
    %1189 = vmatprep.subr.bf16.mxu0 0
    %1190 = vmatpush1.bf16.msra.mxu0 0
    %1191 = vmatprep.subr.bf16.mxu0 0
    %1192 = vmatpush1.bf16.msra.mxu0 0
    %1193 = vmatprep.subr.bf16.mxu0 0
    %1194 = vmatpush1.bf16.msra.mxu0 0
    %1195 = vmatprep.subr.bf16.mxu0 0
    %1196 = vmatpush1.bf16.msra.mxu0 0
    %1197 = vmatprep.subr.bf16.mxu0 0
    %1198 = vmatpush1.bf16.msra.mxu0 0
    %1199 = vmatprep.subr.bf16.mxu0 0
    %1200 = vmatpush1.bf16.msra.mxu0 0
    %1201 = vmatprep.subr.bf16.mxu0 0
    %1202 = vmatpush1.bf16.msra.mxu0 0
    %1203 = vmatprep.mubr.bf16.mxu0 0
    %1204 = vmatmul.mubr.bf16.gmra.mrb[0].mxu0 %v1169
    %v1205 = vpop.f32.mrb[0].mxu0
    %v1206 = vadd.f32 0.0, %v1205
    %v1207 = vpop.f32.mrb[0].mxu0
    %v1208 = vpop.f32.mrb[0].mxu0
    %v1209 = vpop.f32.mrb[0].mxu0
    %1210 = vdwg.mxu0
    %v1211 = vadd.f32 %v1091, %v1206
    %v1212 = vtanh.pop %v1211
    %v1213 = vxor.u32 %v1211, 2147483648
    %v1214 = vmul.f32 %v1213, 1.442695
    %v1215 = vpow.pop %v1214
    %v1216 = vadd.f32 %v1215, 1.0
    %v1217 = vrcp.pop %v1216
    %v1218 = vmul.f32 1.0, %v1217
    %v1219 = vsel %vm247, %v1212, %v1218
    %v1220 = vmul.f32 %v1219, %v1042
    %1222 = vrot.lane.b32.xlu0 %v1219, 64
    %v1223 = vpop.permute.xlu0 %1222
    %v1225 = vmul.f32 %v1219, %v1223
    %1227 = vrot.lane.b32.xlu0 %v1225, 32
    %v1228 = vpop.permute.xlu0 %1227
    %v1230 = vadd.f32 %v1220, %v1228
    %v1231 = vtanh.pop %v1230
    %1233 = vrot.lane.b32.xlu0 %v1231, 64
    %v1234 = vpop.permute.xlu0 %1233
    %v1236 = vmul.f32 %v1219, %v1234
    %v1237 = vpack.c.bf16 %v1236, %v1236
    %1239 = vrot.lane.b32.xlu0 %v1237, 32
    %v1240 = vpop.permute.xlu0 %1239
    %v1242 = vsel %vm265, %v1240, 0
    %1244 = vmatprep.subr.bf16.mxu0 0
    %1245 = vmatpush1.bf16.msra.mxu0 %v261
    %1246 = vmatprep.subr.bf16.mxu0 0
    %1247 = vmatpush1.bf16.msra.mxu0 %v262
    %1248 = vmatprep.subr.bf16.mxu0 0
    %1249 = vmatpush1.bf16.msra.mxu0 0
    %1250 = vmatprep.subr.bf16.mxu0 0
    %1251 = vmatpush1.bf16.msra.mxu0 0
    %1252 = vmatprep.subr.bf16.mxu0 0
    %1253 = vmatpush1.bf16.msra.mxu0 0
    %1254 = vmatprep.subr.bf16.mxu0 0
    %1255 = vmatpush1.bf16.msra.mxu0 0
    %1256 = vmatprep.subr.bf16.mxu0 0
    %1257 = vmatpush1.bf16.msra.mxu0 0
    %1258 = vmatprep.subr.bf16.mxu0 0
    %1259 = vmatpush1.bf16.msra.mxu0 0
    %1260 = vmatprep.subr.bf16.mxu0 0
    %1261 = vmatpush1.bf16.msra.mxu0 0
    %1262 = vmatprep.subr.bf16.mxu0 0
    %1263 = vmatpush1.bf16.msra.mxu0 0
    %1264 = vmatprep.subr.bf16.mxu0 0
    %1265 = vmatpush1.bf16.msra.mxu0 0
    %1266 = vmatprep.subr.bf16.mxu0 0
    %1267 = vmatpush1.bf16.msra.mxu0 0
    %1268 = vmatprep.subr.bf16.mxu0 0
    %1269 = vmatpush1.bf16.msra.mxu0 0
    %1270 = vmatprep.subr.bf16.mxu0 0
    %1271 = vmatpush1.bf16.msra.mxu0 0
    %1272 = vmatprep.subr.bf16.mxu0 0
    %1273 = vmatpush1.bf16.msra.mxu0 0
    %1274 = vmatprep.subr.bf16.mxu0 0
    %1275 = vmatpush1.bf16.msra.mxu0 0
    %1276 = vmatprep.mubr.bf16.mxu0 0
    %1277 = vmatmul.mubr.bf16.gmra.mrb[0].mxu0 %v1242
    %v1278 = vpop.f32.mrb[0].mxu0
    %v1279 = vadd.f32 %v241, %v1278
    %v1280 = vpop.f32.mrb[0].mxu0
    %v1281 = vpop.f32.mrb[0].mxu0
    %v1282 = vpop.f32.mrb[0].mxu0
    %1283 = vdwg.mxu0
    %s1284 = scalar_lea.vmem [#allocation2], 40
    %v1285 = vld [vmem:[%s1284] sm:$0xff]
    %1286 = vmatprep.subr.bf16.mxu0 0
    %1287 = vmatpush1.bf16.msra.mxu0 %v319
    %1288 = vmatprep.subr.bf16.mxu0 0
    %1289 = vmatpush1.bf16.msra.mxu0 %v320
    %1290 = vmatprep.subr.bf16.mxu0 0
    %1291 = vmatpush1.bf16.msra.mxu0 0
    %1292 = vmatprep.subr.bf16.mxu0 0
    %1293 = vmatpush1.bf16.msra.mxu0 0
    %1294 = vmatprep.subr.bf16.mxu0 0
    %1295 = vmatpush1.bf16.msra.mxu0 0
    %1296 = vmatprep.subr.bf16.mxu0 0
    %1297 = vmatpush1.bf16.msra.mxu0 0
    %1298 = vmatprep.subr.bf16.mxu0 0
    %1299 = vmatpush1.bf16.msra.mxu0 0
    %1300 = vmatprep.subr.bf16.mxu0 0
    %1301 = vmatpush1.bf16.msra.mxu0 0
    %1302 = vmatprep.subr.bf16.mxu0 0
    %1303 = vmatpush1.bf16.msra.mxu0 0
    %1304 = vmatprep.subr.bf16.mxu0 0
    %1305 = vmatpush1.bf16.msra.mxu0 0
    %1306 = vmatprep.subr.bf16.mxu0 0
    %1307 = vmatpush1.bf16.msra.mxu0 0
    %1308 = vmatprep.subr.bf16.mxu0 0
    %1309 = vmatpush1.bf16.msra.mxu0 0
    %1310 = vmatprep.subr.bf16.mxu0 0
    %1311 = vmatpush1.bf16.msra.mxu0 0
    %1312 = vmatprep.subr.bf16.mxu0 0
    %1313 = vmatpush1.bf16.msra.mxu0 0
    %1314 = vmatprep.subr.bf16.mxu0 0
    %1315 = vmatpush1.bf16.msra.mxu0 0
    %1316 = vmatprep.subr.bf16.mxu0 0
    %1317 = vmatpush1.bf16.msra.mxu0 0
    %1318 = vmatprep.mubr.bf16.mxu0 0
    %1319 = vmatmul.mubr.bf16.gmra.mrb[0].mxu0 %v1169
    %v1320 = vpop.f32.mrb[0].mxu0
    %v1321 = vadd.f32 0.0, %v1320
    %v1322 = vpop.f32.mrb[0].mxu0
    %v1323 = vpop.f32.mrb[0].mxu0
    %v1324 = vpop.f32.mrb[0].mxu0
    %1325 = vdwg.mxu0
    %v1326 = vadd.f32 %v1285, %v1321
    %v1327 = vtanh.pop %v1326
    %v1328 = vxor.u32 %v1326, 2147483648
    %v1329 = vmul.f32 %v1328, 1.442695
    %v1330 = vpow.pop %v1329
    %v1331 = vadd.f32 %v1330, 1.0
    %v1332 = vrcp.pop %v1331
    %v1333 = vmul.f32 1.0, %v1332
    %v1334 = vsel %vm247, %v1327, %v1333
    %v1335 = vmul.f32 %v1334, %v1157
    %1337 = vrot.lane.b32.xlu0 %v1334, 64
    %v1338 = vpop.permute.xlu0 %1337
    %v1340 = vmul.f32 %v1334, %v1338
    %1342 = vrot.lane.b32.xlu0 %v1340, 32
    %v1343 = vpop.permute.xlu0 %1342
    %v1345 = vadd.f32 %v1335, %v1343
    %v1346 = vtanh.pop %v1345
    %1348 = vrot.lane.b32.xlu0 %v1346, 64
    %v1349 = vpop.permute.xlu0 %1348
    %v1351 = vmul.f32 %v1334, %v1349
    %v1352 = vpack.c.bf16 %v1351, %v1351
    %1354 = vrot.lane.b32.xlu0 %v1352, 32
    %v1355 = vpop.permute.xlu0 %1354
    %v1357 = vsel %vm265, %v1355, 0
    %1359 = vmatprep.subr.bf16.mxu0 0
    %1360 = vmatpush1.bf16.msra.mxu0 %v408
    %1361 = vmatprep.subr.bf16.mxu0 0
    %1362 = vmatpush1.bf16.msra.mxu0 %v409
    %1363 = vmatprep.subr.bf16.mxu0 0
    %1364 = vmatpush1.bf16.msra.mxu0 0
    %1365 = vmatprep.subr.bf16.mxu0 0
    %1366 = vmatpush1.bf16.msra.mxu0 0
    %1367 = vmatprep.subr.bf16.mxu0 0
    %1368 = vmatpush1.bf16.msra.mxu0 0
    %1369 = vmatprep.subr.bf16.mxu0 0
    %1370 = vmatpush1.bf16.msra.mxu0 0
    %1371 = vmatprep.subr.bf16.mxu0 0
    %1372 = vmatpush1.bf16.msra.mxu0 0
    %1373 = vmatprep.subr.bf16.mxu0 0
    %1374 = vmatpush1.bf16.msra.mxu0 0
    %1375 = vmatprep.subr.bf16.mxu0 0
    %1376 = vmatpush1.bf16.msra.mxu0 0
    %1377 = vmatprep.subr.bf16.mxu0 0
    %1378 = vmatpush1.bf16.msra.mxu0 0
    %1379 = vmatprep.subr.bf16.mxu0 0
    %1380 = vmatpush1.bf16.msra.mxu0 0
    %1381 = vmatprep.subr.bf16.mxu0 0
    %1382 = vmatpush1.bf16.msra.mxu0 0
    %1383 = vmatprep.subr.bf16.mxu0 0
    %1384 = vmatpush1.bf16.msra.mxu0 0
    %1385 = vmatprep.subr.bf16.mxu0 0
    %1386 = vmatpush1.bf16.msra.mxu0 0
    %1387 = vmatprep.subr.bf16.mxu0 0
    %1388 = vmatpush1.bf16.msra.mxu0 0
    %1389 = vmatprep.subr.bf16.mxu0 0
    %1390 = vmatpush1.bf16.msra.mxu0 0
    %1391 = vmatprep.mubr.bf16.mxu0 0
    %1392 = vmatmul.mubr.bf16.gmra.mrb[0].mxu0 %v1357
    %v1393 = vpop.f32.mrb[0].mxu0
    %v1394 = vadd.f32 0.0, %v1393
    %v1395 = vpop.f32.mrb[0].mxu0
    %v1396 = vpop.f32.mrb[0].mxu0
    %v1397 = vpop.f32.mrb[0].mxu0
    %1398 = vdwg.mxu0
    %v1399 = vadd.f32 %v1279, %v1394
    %v1400 = vtanh.pop %v1399
    %v1401 = vxor.u32 %v1399, 2147483648
    %v1402 = vmul.f32 %v1401, 1.442695
    %v1403 = vpow.pop %v1402
    %v1404 = vadd.f32 %v1403, 1.0
    %v1405 = vrcp.pop %v1404
    %v1406 = vmul.f32 1.0, %v1405
    %v1407 = vsel %vm247, %v1400, %v1406
    %v1408 = vmul.f32 %v1407, %v1230
    %1410 = vrot.lane.b32.xlu0 %v1407, 64
    %v1411 = vpop.permute.xlu0 %1410
    %v1413 = vmul.f32 %v1407, %v1411
    %1415 = vrot.lane.b32.xlu0 %v1413, 32
    %v1416 = vpop.permute.xlu0 %1415
    %v1418 = vadd.f32 %v1408, %v1416
    %v1419 = vtanh.pop %v1418
    %1421 = vrot.lane.b32.xlu0 %v1419, 64
    %v1422 = vpop.permute.xlu0 %1421
    %v1424 = vmul.f32 %v1407, %v1422
    %v1425 = vpack.c.bf16 %v1424, %v1424
    %1427 = vrot.lane.b32.xlu0 %v1425, 32
    %v1428 = vpop.permute.xlu0 %1427
    %v1430 = vsel %vm265, %v1428, 0
    %1432 = vmatprep.subr.bf16.mxu0 0
    %1433 = vmatpush1.bf16.msra.mxu0 %v261
    %1434 = vmatprep.subr.bf16.mxu0 0
    %1435 = vmatpush1.bf16.msra.mxu0 %v262
    %1436 = vmatprep.subr.bf16.mxu0 0
    %1437 = vmatpush1.bf16.msra.mxu0 0
    %1438 = vmatprep.subr.bf16.mxu0 0
    %1439 = vmatpush1.bf16.msra.mxu0 0
    %1440 = vmatprep.subr.bf16.mxu0 0
    %1441 = vmatpush1.bf16.msra.mxu0 0
    %1442 = vmatprep.subr.bf16.mxu0 0
    %1443 = vmatpush1.bf16.msra.mxu0 0
    %1444 = vmatprep.subr.bf16.mxu0 0
    %1445 = vmatpush1.bf16.msra.mxu0 0
    %1446 = vmatprep.subr.bf16.mxu0 0
    %1447 = vmatpush1.bf16.msra.mxu0 0
    %1448 = vmatprep.subr.bf16.mxu0 0
    %1449 = vmatpush1.bf16.msra.mxu0 0
    %1450 = vmatprep.subr.bf16.mxu0 0
    %1451 = vmatpush1.bf16.msra.mxu0 0
    %1452 = vmatprep.subr.bf16.mxu0 0
    %1453 = vmatpush1.bf16.msra.mxu0 0
    %1454 = vmatprep.subr.bf16.mxu0 0
    %1455 = vmatpush1.bf16.msra.mxu0 0
    %1456 = vmatprep.subr.bf16.mxu0 0
    %1457 = vmatpush1.bf16.msra.mxu0 0
    %1458 = vmatprep.subr.bf16.mxu0 0
    %1459 = vmatpush1.bf16.msra.mxu0 0
    %1460 = vmatprep.subr.bf16.mxu0 0
    %1461 = vmatpush1.bf16.msra.mxu0 0
    %1462 = vmatprep.subr.bf16.mxu0 0
    %1463 = vmatpush1.bf16.msra.mxu0 0
    %1464 = vmatprep.mubr.bf16.mxu0 0
    %1465 = vmatmul.mubr.bf16.gmra.mrb[0].mxu0 %v1430
    %v1466 = vpop.f32.mrb[0].mxu0
    %v1467 = vadd.f32 %v241, %v1466
    %v1468 = vpop.f32.mrb[0].mxu0
    %v1469 = vpop.f32.mrb[0].mxu0
    %v1470 = vpop.f32.mrb[0].mxu0
    %1471 = vdwg.mxu0
    %s1472 = scalar_lea.vmem [#allocation2], 48
    %v1473 = vld [vmem:[%s1472] sm:$0xff]
    %1474 = vmatprep.subr.bf16.mxu0 0
    %1475 = vmatpush1.bf16.msra.mxu0 %v319
    %1476 = vmatprep.subr.bf16.mxu0 0
    %1477 = vmatpush1.bf16.msra.mxu0 %v320
    %1478 = vmatprep.subr.bf16.mxu0 0
    %1479 = vmatpush1.bf16.msra.mxu0 0
    %1480 = vmatprep.subr.bf16.mxu0 0
    %1481 = vmatpush1.bf16.msra.mxu0 0
    %1482 = vmatprep.subr.bf16.mxu0 0
    %1483 = vmatpush1.bf16.msra.mxu0 0
    %1484 = vmatprep.subr.bf16.mxu0 0
    %1485 = vmatpush1.bf16.msra.mxu0 0
    %1486 = vmatprep.subr.bf16.mxu0 0
    %1487 = vmatpush1.bf16.msra.mxu0 0
    %1488 = vmatprep.subr.bf16.mxu0 0
    %1489 = vmatpush1.bf16.msra.mxu0 0
    %1490 = vmatprep.subr.bf16.mxu0 0
    %1491 = vmatpush1.bf16.msra.mxu0 0
    %1492 = vmatprep.subr.bf16.mxu0 0
    %1493 = vmatpush1.bf16.msra.mxu0 0
    %1494 = vmatprep.subr.bf16.mxu0 0
    %1495 = vmatpush1.bf16.msra.mxu0 0
    %1496 = vmatprep.subr.bf16.mxu0 0
    %1497 = vmatpush1.bf16.msra.mxu0 0
    %1498 = vmatprep.subr.bf16.mxu0 0
    %1499 = vmatpush1.bf16.msra.mxu0 0
    %1500 = vmatprep.subr.bf16.mxu0 0
    %1501 = vmatpush1.bf16.msra.mxu0 0
    %1502 = vmatprep.subr.bf16.mxu0 0
    %1503 = vmatpush1.bf16.msra.mxu0 0
    %1504 = vmatprep.subr.bf16.mxu0 0
    %1505 = vmatpush1.bf16.msra.mxu0 0
    %1506 = vmatprep.mubr.bf16.mxu0 0
    %1507 = vmatmul.mubr.bf16.gmra.mrb[0].mxu0 %v1357
    %v1508 = vpop.f32.mrb[0].mxu0
    %v1509 = vadd.f32 0.0, %v1508
    %v1510 = vpop.f32.mrb[0].mxu0
    %v1511 = vpop.f32.mrb[0].mxu0
    %v1512 = vpop.f32.mrb[0].mxu0
    %1513 = vdwg.mxu0
    %v1514 = vadd.f32 %v1473, %v1509
    %v1515 = vtanh.pop %v1514
    %v1516 = vxor.u32 %v1514, 2147483648
    %v1517 = vmul.f32 %v1516, 1.442695
    %v1518 = vpow.pop %v1517
    %v1519 = vadd.f32 %v1518, 1.0
    %v1520 = vrcp.pop %v1519
    %v1521 = vmul.f32 1.0, %v1520
    %v1522 = vsel %vm247, %v1515, %v1521
    %v1523 = vmul.f32 %v1522, %v1345
    %1525 = vrot.lane.b32.xlu0 %v1522, 64
    %v1526 = vpop.permute.xlu0 %1525
    %v1528 = vmul.f32 %v1522, %v1526
    %1530 = vrot.lane.b32.xlu0 %v1528, 32
    %v1531 = vpop.permute.xlu0 %1530
    %v1533 = vadd.f32 %v1523, %v1531
    %v1534 = vtanh.pop %v1533
    %1536 = vrot.lane.b32.xlu0 %v1534, 64
    %v1537 = vpop.permute.xlu0 %1536
    %v1539 = vmul.f32 %v1522, %v1537
    %v1540 = vpack.c.bf16 %v1539, %v1539
    %1542 = vrot.lane.b32.xlu0 %v1540, 32
    %v1543 = vpop.permute.xlu0 %1542
    %v1545 = vsel %vm265, %v1543, 0
    %1547 = vmatprep.subr.bf16.mxu0 0
    %1548 = vmatpush1.bf16.msra.mxu0 %v408
    %1549 = vmatprep.subr.bf16.mxu0 0
    %1550 = vmatpush1.bf16.msra.mxu0 %v409
    %1551 = vmatprep.subr.bf16.mxu0 0
    %1552 = vmatpush1.bf16.msra.mxu0 0
    %1553 = vmatprep.subr.bf16.mxu0 0
    %1554 = vmatpush1.bf16.msra.mxu0 0
    %1555 = vmatprep.subr.bf16.mxu0 0
    %1556 = vmatpush1.bf16.msra.mxu0 0
    %1557 = vmatprep.subr.bf16.mxu0 0
    %1558 = vmatpush1.bf16.msra.mxu0 0
    %1559 = vmatprep.subr.bf16.mxu0 0
    %1560 = vmatpush1.bf16.msra.mxu0 0
    %1561 = vmatprep.subr.bf16.mxu0 0
    %1562 = vmatpush1.bf16.msra.mxu0 0
    %1563 = vmatprep.subr.bf16.mxu0 0
    %1564 = vmatpush1.bf16.msra.mxu0 0
    %1565 = vmatprep.subr.bf16.mxu0 0
    %1566 = vmatpush1.bf16.msra.mxu0 0
    %1567 = vmatprep.subr.bf16.mxu0 0
    %1568 = vmatpush1.bf16.msra.mxu0 0
    %1569 = vmatprep.subr.bf16.mxu0 0
    %1570 = vmatpush1.bf16.msra.mxu0 0
    %1571 = vmatprep.subr.bf16.mxu0 0
    %1572 = vmatpush1.bf16.msra.mxu0 0
    %1573 = vmatprep.subr.bf16.mxu0 0
    %1574 = vmatpush1.bf16.msra.mxu0 0
    %1575 = vmatprep.subr.bf16.mxu0 0
    %1576 = vmatpush1.bf16.msra.mxu0 0
    %1577 = vmatprep.subr.bf16.mxu0 0
    %1578 = vmatpush1.bf16.msra.mxu0 0
    %1579 = vmatprep.mubr.bf16.mxu0 0
    %1580 = vmatmul.mubr.bf16.gmra.mrb[0].mxu0 %v1545
    %v1581 = vpop.f32.mrb[0].mxu0
    %v1582 = vadd.f32 0.0, %v1581
    %v1583 = vpop.f32.mrb[0].mxu0
    %v1584 = vpop.f32.mrb[0].mxu0
    %v1585 = vpop.f32.mrb[0].mxu0
    %1586 = vdwg.mxu0
    %v1587 = vadd.f32 %v1467, %v1582
    %v1588 = vtanh.pop %v1587
    %v1589 = vxor.u32 %v1587, 2147483648
    %v1590 = vmul.f32 %v1589, 1.442695
    %v1591 = vpow.pop %v1590
    %v1592 = vadd.f32 %v1591, 1.0
    %v1593 = vrcp.pop %v1592
    %v1594 = vmul.f32 1.0, %v1593
    %v1595 = vsel %vm247, %v1588, %v1594
    %v1596 = vmul.f32 %v1595, %v1418
    %1598 = vrot.lane.b32.xlu0 %v1595, 64
    %v1599 = vpop.permute.xlu0 %1598
    %v1601 = vmul.f32 %v1595, %v1599
    %1603 = vrot.lane.b32.xlu0 %v1601, 32
    %v1604 = vpop.permute.xlu0 %1603
    %v1606 = vadd.f32 %v1596, %v1604
    %v1607 = vtanh.pop %v1606
    %1609 = vrot.lane.b32.xlu0 %v1607, 64
    %v1610 = vpop.permute.xlu0 %1609
    %v1612 = vmul.f32 %v1595, %v1610
    %v1613 = vpack.c.bf16 %v1612, %v1612
    %1615 = vrot.lane.b32.xlu0 %v1613, 32
    %v1616 = vpop.permute.xlu0 %1615
    %v1618 = vsel %vm265, %v1616, 0
    %1620 = vmatprep.subr.bf16.mxu0 0
    %1621 = vmatpush1.bf16.msra.mxu0 %v261
    %1622 = vmatprep.subr.bf16.mxu0 0
    %1623 = vmatpush1.bf16.msra.mxu0 %v262
    %1624 = vmatprep.subr.bf16.mxu0 0
    %1625 = vmatpush1.bf16.msra.mxu0 0
    %1626 = vmatprep.subr.bf16.mxu0 0
    %1627 = vmatpush1.bf16.msra.mxu0 0
    %1628 = vmatprep.subr.bf16.mxu0 0
    %1629 = vmatpush1.bf16.msra.mxu0 0
    %1630 = vmatprep.subr.bf16.mxu0 0
    %1631 = vmatpush1.bf16.msra.mxu0 0
    %1632 = vmatprep.subr.bf16.mxu0 0
    %1633 = vmatpush1.bf16.msra.mxu0 0
    %1634 = vmatprep.subr.bf16.mxu0 0
    %1635 = vmatpush1.bf16.msra.mxu0 0
    %1636 = vmatprep.subr.bf16.mxu0 0
    %1637 = vmatpush1.bf16.msra.mxu0 0
    %1638 = vmatprep.subr.bf16.mxu0 0
    %1639 = vmatpush1.bf16.msra.mxu0 0
    %1640 = vmatprep.subr.bf16.mxu0 0
    %1641 = vmatpush1.bf16.msra.mxu0 0
    %1642 = vmatprep.subr.bf16.mxu0 0
    %1643 = vmatpush1.bf16.msra.mxu0 0
    %1644 = vmatprep.subr.bf16.mxu0 0
    %1645 = vmatpush1.bf16.msra.mxu0 0
    %1646 = vmatprep.subr.bf16.mxu0 0
    %1647 = vmatpush1.bf16.msra.mxu0 0
    %1648 = vmatprep.subr.bf16.mxu0 0
    %1649 = vmatpush1.bf16.msra.mxu0 0
    %1650 = vmatprep.subr.bf16.mxu0 0
    %1651 = vmatpush1.bf16.msra.mxu0 0
    %1652 = vmatprep.mubr.bf16.mxu0 0
    %1653 = vmatmul.mubr.bf16.gmra.mrb[0].mxu0 %v1618
    %v1654 = vpop.f32.mrb[0].mxu0
    %v1655 = vadd.f32 %v241, %v1654
    %v1656 = vpop.f32.mrb[0].mxu0
    %v1657 = vpop.f32.mrb[0].mxu0
    %v1658 = vpop.f32.mrb[0].mxu0
    %1659 = vdwg.mxu0
    %s1660 = scalar_lea.vmem [#allocation2], 56
    %v1661 = vld [vmem:[%s1660] sm:$0xff]
    %1662 = vmatprep.subr.bf16.mxu0 0
    %1663 = vmatpush1.bf16.msra.mxu0 %v319
    %1664 = vmatprep.subr.bf16.mxu0 0
    %1665 = vmatpush1.bf16.msra.mxu0 %v320
    %1666 = vmatprep.subr.bf16.mxu0 0
    %1667 = vmatpush1.bf16.msra.mxu0 0
    %1668 = vmatprep.subr.bf16.mxu0 0
    %1669 = vmatpush1.bf16.msra.mxu0 0
    %1670 = vmatprep.subr.bf16.mxu0 0
    %1671 = vmatpush1.bf16.msra.mxu0 0
    %1672 = vmatprep.subr.bf16.mxu0 0
    %1673 = vmatpush1.bf16.msra.mxu0 0
    %1674 = vmatprep.subr.bf16.mxu0 0
    %1675 = vmatpush1.bf16.msra.mxu0 0
    %1676 = vmatprep.subr.bf16.mxu0 0
    %1677 = vmatpush1.bf16.msra.mxu0 0
    %1678 = vmatprep.subr.bf16.mxu0 0
    %1679 = vmatpush1.bf16.msra.mxu0 0
    %1680 = vmatprep.subr.bf16.mxu0 0
    %1681 = vmatpush1.bf16.msra.mxu0 0
    %1682 = vmatprep.subr.bf16.mxu0 0
    %1683 = vmatpush1.bf16.msra.mxu0 0
    %1684 = vmatprep.subr.bf16.mxu0 0
    %1685 = vmatpush1.bf16.msra.mxu0 0
    %1686 = vmatprep.subr.bf16.mxu0 0
    %1687 = vmatpush1.bf16.msra.mxu0 0
    %1688 = vmatprep.subr.bf16.mxu0 0
    %1689 = vmatpush1.bf16.msra.mxu0 0
    %1690 = vmatprep.subr.bf16.mxu0 0
    %1691 = vmatpush1.bf16.msra.mxu0 0
    %1692 = vmatprep.subr.bf16.mxu0 0
    %1693 = vmatpush1.bf16.msra.mxu0 0
    %1694 = vmatprep.mubr.bf16.mxu0 0
    %1695 = vmatmul.mubr.bf16.gmra.mrb[0].mxu0 %v1545
    %v1696 = vpop.f32.mrb[0].mxu0
    %v1697 = vadd.f32 0.0, %v1696
    %v1698 = vpop.f32.mrb[0].mxu0
    %v1699 = vpop.f32.mrb[0].mxu0
    %v1700 = vpop.f32.mrb[0].mxu0
    %1701 = vdwg.mxu0
    %v1702 = vadd.f32 %v1661, %v1697
    %v1703 = vtanh.pop %v1702
    %v1704 = vxor.u32 %v1702, 2147483648
    %v1705 = vmul.f32 %v1704, 1.442695
    %v1706 = vpow.pop %v1705
    %v1707 = vadd.f32 %v1706, 1.0
    %v1708 = vrcp.pop %v1707
    %v1709 = vmul.f32 1.0, %v1708
    %v1710 = vsel %vm247, %v1703, %v1709
    %v1711 = vmul.f32 %v1710, %v1533
    %1713 = vrot.lane.b32.xlu0 %v1710, 64
    %v1714 = vpop.permute.xlu0 %1713
    %v1716 = vmul.f32 %v1710, %v1714
    %1718 = vrot.lane.b32.xlu0 %v1716, 32
    %v1719 = vpop.permute.xlu0 %1718
    %v1721 = vadd.f32 %v1711, %v1719
    %v1722 = vtanh.pop %v1721
    %1724 = vrot.lane.b32.xlu0 %v1722, 64
    %v1725 = vpop.permute.xlu0 %1724
    %v1727 = vmul.f32 %v1710, %v1725
    %v1728 = vpack.c.bf16 %v1727, %v1727
    %1730 = vrot.lane.b32.xlu0 %v1728, 32
    %v1731 = vpop.permute.xlu0 %1730
    %v1733 = vsel %vm265, %v1731, 0
    %1735 = vmatprep.subr.bf16.mxu0 0
    %1736 = vmatpush1.bf16.msra.mxu0 %v408
    %1737 = vmatprep.subr.bf16.mxu0 0
    %1738 = vmatpush1.bf16.msra.mxu0 %v409
    %1739 = vmatprep.subr.bf16.mxu0 0
    %1740 = vmatpush1.bf16.msra.mxu0 0
    %1741 = vmatprep.subr.bf16.mxu0 0
    %1742 = vmatpush1.bf16.msra.mxu0 0
    %1743 = vmatprep.subr.bf16.mxu0 0
    %1744 = vmatpush1.bf16.msra.mxu0 0
    %1745 = vmatprep.subr.bf16.mxu0 0
    %1746 = vmatpush1.bf16.msra.mxu0 0
    %1747 = vmatprep.subr.bf16.mxu0 0
    %1748 = vmatpush1.bf16.msra.mxu0 0
    %1749 = vmatprep.subr.bf16.mxu0 0
    %1750 = vmatpush1.bf16.msra.mxu0 0
    %1751 = vmatprep.subr.bf16.mxu0 0
    %1752 = vmatpush1.bf16.msra.mxu0 0
    %1753 = vmatprep.subr.bf16.mxu0 0
    %1754 = vmatpush1.bf16.msra.mxu0 0
    %1755 = vmatprep.subr.bf16.mxu0 0
    %1756 = vmatpush1.bf16.msra.mxu0 0
    %1757 = vmatprep.subr.bf16.mxu0 0
    %1758 = vmatpush1.bf16.msra.mxu0 0
    %1759 = vmatprep.subr.bf16.mxu0 0
    %1760 = vmatpush1.bf16.msra.mxu0 0
    %1761 = vmatprep.subr.bf16.mxu0 0
    %1762 = vmatpush1.bf16.msra.mxu0 0
    %1763 = vmatprep.subr.bf16.mxu0 0
    %1764 = vmatpush1.bf16.msra.mxu0 0
    %1765 = vmatprep.subr.bf16.mxu0 0
    %1766 = vmatpush1.bf16.msra.mxu0 0
    %1767 = vmatprep.mubr.bf16.mxu0 0
    %1768 = vmatmul.mubr.bf16.gmra.mrb[0].mxu0 %v1733
    %v1769 = vpop.f32.mrb[0].mxu0
    %v1770 = vadd.f32 0.0, %v1769
    %v1771 = vpop.f32.mrb[0].mxu0
    %v1772 = vpop.f32.mrb[0].mxu0
    %v1773 = vpop.f32.mrb[0].mxu0
    %1774 = vdwg.mxu0
    %v1775 = vadd.f32 %v1655, %v1770
    %v1776 = vtanh.pop %v1775
    %v1777 = vxor.u32 %v1775, 2147483648
    %v1778 = vmul.f32 %v1777, 1.442695
    %v1779 = vpow.pop %v1778
    %v1780 = vadd.f32 %v1779, 1.0
    %v1781 = vrcp.pop %v1780
    %v1782 = vmul.f32 1.0, %v1781
    %v1783 = vsel %vm247, %v1776, %v1782
    %v1784 = vmul.f32 %v1783, %v1606
    %1786 = vrot.lane.b32.xlu0 %v1783, 64
    %v1787 = vpop.permute.xlu0 %1786
    %v1789 = vmul.f32 %v1783, %v1787
    %1791 = vrot.lane.b32.xlu0 %v1789, 32
    %v1792 = vpop.permute.xlu0 %1791
    %v1794 = vadd.f32 %v1784, %v1792
    %v1795 = vtanh.pop %v1794
    %1797 = vrot.lane.b32.xlu0 %v1795, 64
    %v1798 = vpop.permute.xlu0 %1797
    %v1800 = vmul.f32 %v1783, %v1798
    %1802 = vrot.lane.b32.xlu0 %v1727, 32
    %v1803 = vpop.permute.xlu0 %1802
    %1805 = vst.msk [vmem:[#allocation3] sm:$0xff] %vm265, %v1803
    %1807 = vrot.lane.b32.xlu0 %v1721, 96
    %v1808 = vpop.permute.xlu0 %1807
    %1810 = vst.msk [vmem:[#allocation4] sm:$0xff] %vm265, %v1808
    %1812 = vrot.lane.b32.xlu0 %v1800, 32
    %v1813 = vpop.permute.xlu0 %1812
    %1815 = vst.msk [vmem:[#allocation5] sm:$0xff] %vm265, %v1813
    %1817 = vrot.lane.b32.xlu0 %v1794, 96
    %v1818 = vpop.permute.xlu0 %1817
    %1820 = vst.msk [vmem:[#allocation6] sm:$0xff] %vm265, %v1818
    // Predicated region
    $region62: #{tpu_custom_call.1} parent=1 // pred_check
      %p1821 = pneg %p102
    $region63: #{tpu_custom_call.1} parent=1 // pred_check_branch
      %1823 = sbr.rel (%p1821) target = $region65
    $region64: #{tpu_custom_call.1} parent=1 // pred_region
      %v1824 = vpack.c.bf16 %v1800, %v1800
      %v1825 = vld [vmem:[#allocation15] sm:$0xf]
      %v1826 = vld [vmem:[#allocation15 + $0x4] sm:$0xf]
      %v1827 = vld [vmem:[#allocation15 + $0x8] sm:$0xf]
      %v1828 = vld [vmem:[#allocation15 + $0xc] sm:$0xf]
      %v1829 = vld [vmem:[%s8] sm:$0x1]
      %v1831 = vlaneseq
      %v1832 = vshrl.u32 %v1831, 7
      %v1833 = vsub.s32 0, %v1832
      %v1834 = vrot.slane %v1829, %v1833
      %1837 = vrot.lane.b32.xlu0 %v1824, 32
      %v1838 = vpop.permute.xlu0 %1837
      %v1843 = vunpack.c.l.b16 %v1825
      %v1844 = vunpack.c.l.b16 %v1826
      %v1845 = vunpack.c.l.b16 %v1827
      %v1846 = vunpack.c.l.b16 %v1828
      %v1847 = vpack.c.b16 %v1844, %v1843
      %v1848 = vpack.c.b16 %v1846, %v1845
      %v1852 = vsel %vm265, %v1838, 0
      %1854 = vmatprep.subr.bf16.mxu0 0
      %1855 = vmatpush1.bf16.msra.mxu0 %v1847
      %1856 = vmatprep.subr.bf16.mxu0 0
      %1857 = vmatpush1.bf16.msra.mxu0 %v1848
      %1858 = vmatprep.subr.bf16.mxu0 0
      %1859 = vmatpush1.bf16.msra.mxu0 0
      %1860 = vmatprep.subr.bf16.mxu0 0
      %1861 = vmatpush1.bf16.msra.mxu0 0
      %1862 = vmatprep.subr.bf16.mxu0 0
      %1863 = vmatpush1.bf16.msra.mxu0 0
      %1864 = vmatprep.subr.bf16.mxu0 0
      %1865 = vmatpush1.bf16.msra.mxu0 0
      %1866 = vmatprep.subr.bf16.mxu0 0
      %1867 = vmatpush1.bf16.msra.mxu0 0
      %1868 = vmatprep.subr.bf16.mxu0 0
      %1869 = vmatpush1.bf16.msra.mxu0 0
      %1870 = vmatprep.subr.bf16.mxu0 0
      %1871 = vmatpush1.bf16.msra.mxu0 0
      %1872 = vmatprep.subr.bf16.mxu0 0
      %1873 = vmatpush1.bf16.msra.mxu0 0
      %1874 = vmatprep.subr.bf16.mxu0 0
      %1875 = vmatpush1.bf16.msra.mxu0 0
      %1876 = vmatprep.subr.bf16.mxu0 0
      %1877 = vmatpush1.bf16.msra.mxu0 0
      %1878 = vmatprep.subr.bf16.mxu0 0
      %1879 = vmatpush1.bf16.msra.mxu0 0
      %1880 = vmatprep.subr.bf16.mxu0 0
      %1881 = vmatpush1.bf16.msra.mxu0 0
      %1882 = vmatprep.subr.bf16.mxu0 0
      %1883 = vmatpush1.bf16.msra.mxu0 0
      %1884 = vmatprep.subr.bf16.mxu0 0
      %1885 = vmatpush1.bf16.msra.mxu0 0
      %1886 = vmatprep.mubr.bf16.mxu0 0
      %1887 = vmatmul.mubr.bf16.gmra.mrb[0].mxu0 %v1852
      %v1888 = vpop.f32.mrb[0].mxu0
      %v1889 = vadd.f32 %v1834, %v1888
      %v1890 = vpop.f32.mrb[0].mxu0
      %v1891 = vpop.f32.mrb[0].mxu0
      %v1892 = vpop.f32.mrb[0].mxu0
      %1893 = vdwg.mxu0
      %1894 = vst [vmem:[#allocation16] sm:$0xff] %v1889
    $region65: #{tpu_custom_call.1} parent=1 // pred_fallthru
      _
    // Predicated region
    $region66: #{tpu_custom_call.1} parent=1 // pred_check
      _
    $region67: #{tpu_custom_call.1} parent=1 // pred_check_branch
      %1896 = sbr.rel (0) target = $region69
    $region68: #{tpu_custom_call.1} parent=1 // pred_region
      %s1898 = ssub.s32 128, 128
      %1899 = vsyncadd [#allocation9], %s1898
      %s1901 = sshll.u32 [#allocation16], 4
      %s1902 = int_to_ptr.vmem [resolvable:$true] %s1901
      %1904 = dma.vmem_to_hbm [thread:$0]  %s1902, 128, %s9, [#allocation9]
    $region69: #{tpu_custom_call.1} parent=1 // pred_fallthru
      _
    // Predicated region
    $region70: #{tpu_custom_call.1} parent=1 // pred_check
      _
    $region71: #{tpu_custom_call.1} parent=1 // pred_check_branch
      %1906 = sbr.rel (0) target = $region73
    $region72: #{tpu_custom_call.1} parent=1 // pred_region
      %1907 = dma.done [#allocation9], 128
    $region73: #{tpu_custom_call.1} parent=1 // pred_fallthru
      _
    %1908 = vsyncpa [#allocation8], 1
    %1909 = vsyncpa [#allocation11], 1
    %1910 = vsyncpa [#allocation14], 1
    %1911 = vsyncpa [#allocation9], 1

</llo_original>
